<compile_context>
chip_gen: v7x
topology: tpu7x:2x2x1
jax: 0.10.0
libtpu: 0.0.40
codegen_flags: <defaults>
</compile_context>

<pallas_src>
import jax
import jax.numpy as jnp
from jax import lax
from jax.experimental import pallas as pl
from jax.experimental.pallas import tpu as pltpu

# ---------------------------------------------------------------- sizes
B, T, M, W = 2, 8, 4, 8          # batch, trading days, msgs/day, words/msg
V, E, P = 32, 16, 3              # vocab, word-embed dim, price features
H, Z, C, A = 32, 16, 2, 16       # hidden, latent, classes, attention dim
ALPHA = 0.5                      # aux-loss weight
BT = B * T
MW = M * W
LANES = 128
NG = LANES // V                  # lane groups for the packed histogram
assert NG == 4 and MW % NG == 0 and (V & (V - 1)) == 0

# consolidated bf16 weight-blob layout (row offsets multiples of 16 for bf16 packing)
ROW_WHP, ROW_WHC, ROW_WMULV, ROW_WG, ROW_WYAD = 0, 16, 48, 80, 96
WB_ROWS, WB_COLS = 128, 64
# small f32 vector blob rows
SROW_BH, SROW_BMULV, SROW_BG, SROW_BY, SROW_VA, SROW_LAM = 0, 1, 2, 3, 4, 5
SB_ROWS, SB_COLS = 8, 32


# ================================================================ fused kernel
# MIE (lane-packed histogram -> folded corpus projection) + VMD (per-day encoder,
# mean latent) + ATA (temporal attention + total loss), one grid step, no scratch.
def stocknet_kernel(idx_ref,                                   # scalar prefetch [B] (SMEM)
                    wid_ref, pyd_ref, wblob_ref, sblob_ref,    # consolidated inputs
                    ypred_ref, loss_ref):                      # outputs
    f32 = jnp.float32
    bf16 = jnp.bfloat16
    eps = 1e-9

    # ---------------- small f32 vectors (one DMA, static row slices)
    bh    = sblob_ref[SROW_BH:SROW_BH + 1, 0:H]                # [1, H]
    bmulv = sblob_ref[SROW_BMULV:SROW_BMULV + 1, 0:2 * Z]      # [1, 2Z]
    bg    = sblob_ref[SROW_BG:SROW_BG + 1, 0:H]                # [1, H]
    by    = sblob_ref[SROW_BY:SROW_BY + 1, 0:C]                # [1, C]
    va    = sblob_ref[SROW_VA:SROW_VA + 1, 0:A]                # [1, A]
    lam   = sblob_ref[SROW_LAM:SROW_LAM + 1, 0:1]              # [1, 1]

    # ---------------- bf16 matmul weights (one DMA, static slices)
    whp   = wblob_ref[ROW_WHP:ROW_WHP + P, 0:H]                # [P, H]
    whc_f = wblob_ref[ROW_WHC:ROW_WHC + V, 0:H]                # [V, H]  (word_table@whc)/MW
    wmulv = wblob_ref[ROW_WMULV:ROW_WMULV + H, 0:2 * Z]        # [H, 2Z]
    wg    = wblob_ref[ROW_WG:ROW_WG + Z, 0:H]                  # [Z, H]
    wyad  = wblob_ref[ROW_WYAD:ROW_WYAD + H, 0:C + 2 * A]      # [H, C+2A]

    # ---------------- MIE: lane-packed word-count histogram
    ids = wid_ref[...]                                         # [BT, MW] int32
    lane = lax.broadcasted_iota(jnp.int32, (BT, LANES), 1)
    vmod = lane & (V - 1)                                      # vocab id per lane, 4x tiled
    m0 = lane < V
    m1 = lane < 2 * V
    m2 = lane < 3 * V
    q = MW // NG
    acc = jnp.zeros((BT, LANES), jnp.int32)
    for j in range(q):                                         # 8 iterations (was 32)
        c0 = ids[:, j + 0 * q: j + 0 * q + 1]
        c1 = ids[:, j + 1 * q: j + 1 * q + 1]
        c2 = ids[:, j + 2 * q: j + 2 * q + 1]
        c3 = ids[:, j + 3 * q: j + 3 * q + 1]
        sel = jnp.where(m0, c0, jnp.where(m1, c1, jnp.where(m2, c2, c3)))
        acc = acc + (sel == vmod).astype(jnp.int32)
    # fold the 4 lane groups down onto lanes [0, V)  (XLU rolls, direction-agnostic)
    folded = acc + pltpu.roll(acc, shift=2 * V, axis=1)
    folded = folded + pltpu.roll(folded, shift=V, axis=1)
    counts = folded[:, 0:V].astype(bf16)                       # [BT, V], exact in bf16

    # ---------------- VMD encoder over all B*T day rows at once (bf16 MXU, f32 acc)
    price = pyd_ref[:, 0:P].astype(bf16)                       # [BT, P]
    ytrue = pyd_ref[:, P:P + C]                                # [BT, C] f32

    h = jnp.tanh(jnp.dot(price, whp, preferred_element_type=f32)
                 + jnp.dot(counts, whc_f, preferred_element_type=f32)
                 + bh)                                         # [BT, H]

    mulv = jnp.dot(h.astype(bf16), wmulv, preferred_element_type=f32) + bmulv
    mu = mulv[:, :Z]                                           # [BT, Z]
    logvar = mulv[:, Z:]                                       # [BT, Z]
    # TODO(synk): training-phase VMD samples z ~ N(mu, exp(logvar)); we use the mean.
    z = mu

    g_all = jnp.tanh(jnp.dot(z.astype(bf16), wg, preferred_element_type=f32) + bg)

    # merged head: [logits | attn projection | target projection] in one MXU push
    ya = jnp.dot(g_all.astype(bf16), wyad, preferred_element_type=f32)   # [BT, C+2A]
    logits = ya[:, :C] + by                                    # [BT, C]
    proj_a = ya[:, C:C + A]                                    # [BT, A]
    proj_d = ya[:, C + A:C + 2 * A]                            # [BT, A]

    # log-softmax + per-day NLL for all rows
    mx = jnp.max(logits, axis=-1, keepdims=True)
    shifted = logits - mx
    lse = jnp.log(jnp.sum(jnp.exp(shifted), axis=-1, keepdims=True))
    logp = shifted - lse                                       # [BT, C]
    nll = -jnp.sum(ytrue * logp, axis=-1, keepdims=True)       # [BT, 1]

    kl = 0.5 * jnp.sum(jnp.exp(logvar) + mu * mu - 1.0 - logvar,
                       axis=-1, keepdims=True)                 # [BT, 1] KL(q || N(0,1))

    # ---------------- ATA: per-batch-item attention + loss (B=2, unrolled, all in vregs)
    day = lax.broadcasted_iota(jnp.int32, (T, 1), 0)
    total = jnp.zeros((1, 1), f32)
    ypred_rows = []
    for b in range(B):
        idx_b = idx_ref[b]                                     # scalar from SMEM
        onehot = (day == idx_b).astype(f32)                    # [T, 1] target-day selector
        maskc = (day < idx_b).astype(f32)                      # [T, 1] auxiliary days

        s0, s1 = b * T, (b + 1) * T                            # static row slices
        pd_b = jnp.sum(proj_d[s0:s1, :] * onehot, axis=0, keepdims=True)   # [1, A]
        u = jnp.tanh(proj_a[s0:s1, :] + pd_b)                  # [T, A]
        score = jnp.sum(u * va, axis=-1, keepdims=True)        # [T, 1]

        neg = jnp.where(maskc > 0.0, score, -1e30)
        mmax = jnp.max(neg, axis=0, keepdims=True)
        esc = jnp.exp(neg - mmax) * maskc
        att = esc / (jnp.sum(esc, axis=0, keepdims=True) + eps)           # [T, 1]

        nll_b = nll[s0:s1, :]                                  # [T, 1]
        kl_b = kl[s0:s1, :]                                    # [T, 1]
        main_nll = jnp.sum(nll_b * onehot, axis=0, keepdims=True)         # [1, 1]
        aux_term = jnp.sum(att * nll_b, axis=0, keepdims=True)            # [1, 1]
        # TODO(synk): KL averaged over auxiliary days only (target-day KL excluded),
        # matching the previous implementation's forward semantics.
        kl_term = (jnp.sum(kl_b * maskc, axis=0, keepdims=True)
                   / (jnp.sum(maskc, axis=0, keepdims=True) + eps))        # [1, 1]

        total = total + main_nll + ALPHA * aux_term + lam * kl_term

        logp_t = jnp.sum(logp[s0:s1, :] * onehot, axis=0, keepdims=True)  # [1, C]
        ypred_rows.append(jnp.exp(logp_t))

    ypred_ref[...] = jnp.concatenate(ypred_rows, axis=0)       # [B, C], single store
    loss_ref[...] = total * (1.0 / B)


# ================================================================ wrapper
def stocknet_forward(inputs, is_training_phase, params, global_step):
    assert isinstance(inputs, dict)
    assert isinstance(is_training_phase, bool)

    word_batch = inputs['word_batch']
    price = inputs['price_batch'].astype(jnp.float32).reshape(BT, P)
    y_batch = inputs['y_batch'].astype(jnp.float32)
    ytrue = y_batch.reshape(BT, C)
    idx = (inputs['T_batch'] - 1).astype(jnp.int32)            # target-day index per item
    wid = word_batch.reshape(BT, MW).astype(jnp.int32)

    # KL annealing weight (depends on global_step, mirroring StockNet).
    lam = jnp.minimum(1.0, (global_step.astype(jnp.float32) + 1.0) / 100.0)

    # fold the corpus-embedding matmul into the encoder weight:  counts @ whc_folded
    whc_folded = (params['word_table'] @ params['whc']) * (1.0 / MW)      # [V, H]

    # -------- consolidated bf16 matmul-weight blob (single DMA) --------
    wblob = jnp.zeros((WB_ROWS, WB_COLS), jnp.float32)
    wblob = wblob.at[ROW_WHP:ROW_WHP + P, 0:H].set(params['whp'])
    wblob = wblob.at[ROW_WHC:ROW_WHC + V, 0:H].set(whc_folded)
    wblob = wblob.at[ROW_WMULV:ROW_WMULV + H, 0:2 * Z].set(params['wmulv'])
    wblob = wblob.at[ROW_WG:ROW_WG + Z, 0:H].set(params['wg'])
    wblob = wblob.at[ROW_WYAD:ROW_WYAD + H, 0:C + 2 * A].set(params['wyad'])
    wblob = wblob.astype(jnp.bfloat16)

    # -------- small f32 vector blob: biases, va, lambda (single DMA) --------
    sblob = jnp.zeros((SB_ROWS, SB_COLS), jnp.float32)
    sblob = sblob.at[SROW_BH, 0:H].set(params['bh'][0])
    sblob = sblob.at[SROW_BMULV, 0:2 * Z].set(params['bmulv'][0])
    sblob = sblob.at[SROW_BG, 0:H].set(params['bg'][0])
    sblob = sblob.at[SROW_BY, 0:C].set(params['by'][0])
    sblob = sblob.at[SROW_VA, 0:A].set(params['va'][0])
    sblob = sblob.at[SROW_LAM, 0].set(lam)

    # -------- packed price + labels (single DMA) --------
    pyd = jnp.zeros((BT, 8), jnp.float32)
    pyd = pyd.at[:, 0:P].set(price)
    pyd = pyd.at[:, P:P + C].set(ytrue)

    operands = [wid, pyd, wblob, sblob]

    def full_spec(shape):
        nd = len(shape)
        return pl.BlockSpec(shape, lambda i, *_: (0,) * nd)

    grid_spec = pltpu.PrefetchScalarGridSpec(
        num_scalar_prefetch=1,                                 # idx -> SMEM
        grid=(1,),                                             # single step, whole batch
        in_specs=[full_spec(op.shape) for op in operands],
        out_specs=[full_spec((B, C)), full_spec((1, 1))],
        scratch_shapes=[],
    )

    y_pred, loss = pl.pallas_call(
        stocknet_kernel,
        grid_spec=grid_spec,
        out_shape=[jax.ShapeDtypeStruct((B, C), jnp.float32),
                   jax.ShapeDtypeStruct((1, 1), jnp.float32)],
        compiler_params=pltpu.CompilerParams(dimension_semantics=("arbitrary",)),
    )(idx, *operands)

    # TODO(synk): the PyTorch module mutates self.global_step in forward; JAX is
    # functional, so the caller must carry global_step + 1 forward.
    return y_batch, y_pred, loss[0, 0]


# ================================================================ params
def init_params(key):
    ks = jax.random.split(key, 12)

    def n(k, shape):
        return jax.random.normal(k, shape, jnp.float32) * 0.1

    wmu, wlv = n(ks[3], (H, Z)), n(ks[4], (H, Z))
    wy, wa, wd = n(ks[6], (H, C)), n(ks[7], (H, A)), n(ks[8], (H, A))
    return {
        'word_table': n(ks[0], (V, E)),                        # word_table_init
        'whp': n(ks[1], (P, H)),
        'whc': n(ks[2], (E, H)),
        'bh': jnp.zeros((1, H), jnp.float32),
        'wmulv': jnp.concatenate([wmu, wlv], axis=1),          # merged [H, 2Z] (mu | logvar)
        'bmulv': jnp.zeros((1, 2 * Z), jnp.float32),
        'wg': n(ks[5], (Z, H)),
        'bg': jnp.zeros((1, H), jnp.float32),
        'wyad': jnp.concatenate([wy, wa, wd], axis=1),         # merged [H, C+2A]
        'by': jnp.zeros((1, C), jnp.float32),
        'va': n(ks[9], (1, A)),
    }


if __name__ == "__main__":
    key = jax.random.PRNGKey(0)
    kp, kw, kpr, ky, kt = jax.random.split(key, 5)

    params = init_params(kp)
    word_batch = jax.random.randint(kw, (B, T, M, W), 0, V, dtype=jnp.int32)
    price_batch = jax.random.normal(kpr, (B, T, P), jnp.float32)
    labels = jax.random.randint(ky, (B, T), 0, C)
    y_batch = jax.nn.one_hot(labels, C, dtype=jnp.float32)
    T_batch = jax.random.randint(kt, (B,), 2, T + 1, dtype=jnp.int32)

    inputs = {'word_batch': word_batch, 'price_batch': price_batch,
              'y_batch': y_batch, 'T_batch': T_batch}
    global_step = jnp.int32(0)

    y_true, y_pred, loss = stocknet_forward(inputs, True, params, global_step)
    jax.block_until_ready((y_true, y_pred, loss))
    print("KERNEL_OK")
</pallas_src>

<mosaic_0001>
module attributes {stable_mosaic.version = 11 : i64} {
  func.func @stocknet_kernel(%arg0: i32, %arg1: memref<2xi32, #tpu.memory_space<smem>>, %arg2: memref<16x32xi32, #tpu.memory_space<vmem>>, %arg3: memref<16x8xf32, #tpu.memory_space<vmem>>, %arg4: memref<128x64xbf16, #tpu.memory_space<vmem>>, %arg5: memref<8x32xf32, #tpu.memory_space<vmem>>, %arg6: memref<2x2xf32, #tpu.memory_space<vmem>>, %arg7: memref<1x1xf32, #tpu.memory_space<vmem>>) attributes {dimension_semantics = [#tpu.dimension_semantics<arbitrary>], iteration_bounds = array<i64: 1>, scalar_prefetch = 1 : i64, scratch_operands = 0 : i64, tpu.core_type = #tpu.core_type<tc>, window_params = [{pipeline_mode = #tpu.pipeline_mode<synchronous>, transform_indices = @transform_0, window_bounds = array<i64: 16, 32>}, {pipeline_mode = #tpu.pipeline_mode<synchronous>, transform_indices = @transform_1, window_bounds = array<i64: 16, 8>}, {pipeline_mode = #tpu.pipeline_mode<synchronous>, transform_indices = @transform_2, window_bounds = array<i64: 128, 64>}, {pipeline_mode = #tpu.pipeline_mode<synchronous>, transform_indices = @transform_3, window_bounds = array<i64: 8, 32>}, {pipeline_mode = #tpu.pipeline_mode<synchronous>, transform_indices = @transform_4, window_bounds = array<i64: 2, 2>}, {pipeline_mode = #tpu.pipeline_mode<synchronous>, transform_indices = @transform_5, window_bounds = array<i64: 1, 1>}]} {
    %c0 = arith.constant 0 : index
    %c0_0 = arith.constant 0 : index
    %0 = vector.load %arg5[%c0, %c0_0] : memref<8x32xf32, #tpu.memory_space<vmem>>, vector<1x32xf32>
    %c1 = arith.constant 1 : index
    %c0_1 = arith.constant 0 : index
    %1 = vector.load %arg5[%c1, %c0_1] : memref<8x32xf32, #tpu.memory_space<vmem>>, vector<1x32xf32>
    %c2 = arith.constant 2 : index
    %c0_2 = arith.constant 0 : index
    %2 = vector.load %arg5[%c2, %c0_2] : memref<8x32xf32, #tpu.memory_space<vmem>>, vector<1x32xf32>
    %c3 = arith.constant 3 : index
    %c0_3 = arith.constant 0 : index
    %3 = vector.load %arg5[%c3, %c0_3] : memref<8x32xf32, #tpu.memory_space<vmem>>, vector<1x2xf32>
    %c4 = arith.constant 4 : index
    %c0_4 = arith.constant 0 : index
    %4 = vector.load %arg5[%c4, %c0_4] : memref<8x32xf32, #tpu.memory_space<vmem>>, vector<1x16xf32>
    %c5 = arith.constant 5 : index
    %c0_5 = arith.constant 0 : index
    %5 = vector.load %arg5[%c5, %c0_5] : memref<8x32xf32, #tpu.memory_space<vmem>>, vector<1x1xf32>
    %c0_6 = arith.constant 0 : index
    %c0_7 = arith.constant 0 : index
    %6 = vector.load %arg4[%c0_6, %c0_7] : memref<128x64xbf16, #tpu.memory_space<vmem>>, vector<3x32xbf16>
    %c16 = arith.constant 16 : index
    %c0_8 = arith.constant 0 : index
    %7 = vector.load %arg4[%c16, %c0_8] : memref<128x64xbf16, #tpu.memory_space<vmem>>, vector<32x32xbf16>
    %c48 = arith.constant 48 : index
    %c0_9 = arith.constant 0 : index
    %8 = vector.load %arg4[%c48, %c0_9] : memref<128x64xbf16, #tpu.memory_space<vmem>>, vector<32x32xbf16>
    %c80 = arith.constant 80 : index
    %c0_10 = arith.constant 0 : index
    %9 = vector.load %arg4[%c80, %c0_10] : memref<128x64xbf16, #tpu.memory_space<vmem>>, vector<16x32xbf16>
    %c96 = arith.constant 96 : index
    %c0_11 = arith.constant 0 : index
    %10 = vector.load %arg4[%c96, %c0_11] : memref<128x64xbf16, #tpu.memory_space<vmem>>, vector<32x34xbf16>
    %c0_12 = arith.constant 0 : index
    %c0_13 = arith.constant 0 : index
    %11 = vector.load %arg2[%c0_12, %c0_13] : memref<16x32xi32, #tpu.memory_space<vmem>>, vector<16x32xi32>
    %12 = tpu.iota {dimensions = array<i32: 1>} : vector<16x128xi32>
    %c31_i32 = arith.constant 31 : i32
    %13 = vector.broadcast %c31_i32 : i32 to vector<16x128xi32>
    %14 = arith.andi %12, %13 : vector<16x128xi32>
    %c32_i32 = arith.constant 32 : i32
    %15 = vector.broadcast %c32_i32 : i32 to vector<16x128xi32>
    %16 = arith.cmpi slt, %12, %15 : vector<16x128xi32>
    %c64_i32 = arith.constant 64 : i32
    %17 = vector.broadcast %c64_i32 : i32 to vector<16x128xi32>
    %18 = arith.cmpi slt, %12, %17 : vector<16x128xi32>
    %c96_i32 = arith.constant 96 : i32
    %19 = vector.broadcast %c96_i32 : i32 to vector<16x128xi32>
    %20 = arith.cmpi slt, %12, %19 : vector<16x128xi32>
    %c0_i32 = arith.constant 0 : i32
    %21 = vector.broadcast %c0_i32 : i32 to vector<16x128xi32>
    %22 = vector.extract_strided_slice %11 {offsets = [0, 0], sizes = [16, 1], strides = [1, 1]} : vector<16x32xi32> to vector<16x1xi32>
    %23 = vector.extract_strided_slice %11 {offsets = [0, 8], sizes = [16, 1], strides = [1, 1]} : vector<16x32xi32> to vector<16x1xi32>
    %24 = vector.extract_strided_slice %11 {offsets = [0, 16], sizes = [16, 1], strides = [1, 1]} : vector<16x32xi32> to vector<16x1xi32>
    %25 = vector.extract_strided_slice %11 {offsets = [0, 24], sizes = [16, 1], strides = [1, 1]} : vector<16x32xi32> to vector<16x1xi32>
    %26 = vector.shape_cast %24 : vector<16x1xi32> to vector<16x1xi32>
    %27 = vector.broadcast %26 : vector<16x1xi32> to vector<16x128xi32>
    %28 = vector.shape_cast %25 : vector<16x1xi32> to vector<16x1xi32>
    %29 = vector.broadcast %28 : vector<16x1xi32> to vector<16x128xi32>
    %30 = arith.select %20, %27, %29 : vector<16x128xi1>, vector<16x128xi32>
    %31 = vector.shape_cast %23 : vector<16x1xi32> to vector<16x1xi32>
    %32 = vector.broadcast %31 : vector<16x1xi32> to vector<16x128xi32>
    %33 = arith.select %18, %32, %30 : vector<16x128xi1>, vector<16x128xi32>
    %34 = vector.shape_cast %22 : vector<16x1xi32> to vector<16x1xi32>
    %35 = vector.broadcast %34 : vector<16x1xi32> to vector<16x128xi32>
    %36 = arith.select %16, %35, %33 : vector<16x128xi1>, vector<16x128xi32>
    %37 = arith.cmpi eq, %36, %14 : vector<16x128xi32>
    %38 = arith.extui %37 : vector<16x128xi1> to vector<16x128xi32>
    %39 = arith.addi %21, %38 : vector<16x128xi32>
    %40 = vector.extract_strided_slice %11 {offsets = [0, 1], sizes = [16, 1], strides = [1, 1]} : vector<16x32xi32> to vector<16x1xi32>
    %41 = vector.extract_strided_slice %11 {offsets = [0, 9], sizes = [16, 1], strides = [1, 1]} : vector<16x32xi32> to vector<16x1xi32>
    %42 = vector.extract_strided_slice %11 {offsets = [0, 17], sizes = [16, 1], strides = [1, 1]} : vector<16x32xi32> to vector<16x1xi32>
    %43 = vector.extract_strided_slice %11 {offsets = [0, 25], sizes = [16, 1], strides = [1, 1]} : vector<16x32xi32> to vector<16x1xi32>
    %44 = vector.shape_cast %42 : vector<16x1xi32> to vector<16x1xi32>
    %45 = vector.broadcast %44 : vector<16x1xi32> to vector<16x128xi32>
    %46 = vector.shape_cast %43 : vector<16x1xi32> to vector<16x1xi32>
    %47 = vector.broadcast %46 : vector<16x1xi32> to vector<16x128xi32>
    %48 = arith.select %20, %45, %47 : vector<16x128xi1>, vector<16x128xi32>
    %49 = vector.shape_cast %41 : vector<16x1xi32> to vector<16x1xi32>
    %50 = vector.broadcast %49 : vector<16x1xi32> to vector<16x128xi32>
    %51 = arith.select %18, %50, %48 : vector<16x128xi1>, vector<16x128xi32>
    %52 = vector.shape_cast %40 : vector<16x1xi32> to vector<16x1xi32>
    %53 = vector.broadcast %52 : vector<16x1xi32> to vector<16x128xi32>
    %54 = arith.select %16, %53, %51 : vector<16x128xi1>, vector<16x128xi32>
    %55 = arith.cmpi eq, %54, %14 : vector<16x128xi32>
    %56 = arith.extui %55 : vector<16x128xi1> to vector<16x128xi32>
    %57 = arith.addi %39, %56 : vector<16x128xi32>
    %58 = vector.extract_strided_slice %11 {offsets = [0, 2], sizes = [16, 1], strides = [1, 1]} : vector<16x32xi32> to vector<16x1xi32>
    %59 = vector.extract_strided_slice %11 {offsets = [0, 10], sizes = [16, 1], strides = [1, 1]} : vector<16x32xi32> to vector<16x1xi32>
    %60 = vector.extract_strided_slice %11 {offsets = [0, 18], sizes = [16, 1], strides = [1, 1]} : vector<16x32xi32> to vector<16x1xi32>
    %61 = vector.extract_strided_slice %11 {offsets = [0, 26], sizes = [16, 1], strides = [1, 1]} : vector<16x32xi32> to vector<16x1xi32>
    %62 = vector.shape_cast %60 : vector<16x1xi32> to vector<16x1xi32>
    %63 = vector.broadcast %62 : vector<16x1xi32> to vector<16x128xi32>
    %64 = vector.shape_cast %61 : vector<16x1xi32> to vector<16x1xi32>
    %65 = vector.broadcast %64 : vector<16x1xi32> to vector<16x128xi32>
    %66 = arith.select %20, %63, %65 : vector<16x128xi1>, vector<16x128xi32>
    %67 = vector.shape_cast %59 : vector<16x1xi32> to vector<16x1xi32>
    %68 = vector.broadcast %67 : vector<16x1xi32> to vector<16x128xi32>
    %69 = arith.select %18, %68, %66 : vector<16x128xi1>, vector<16x128xi32>
    %70 = vector.shape_cast %58 : vector<16x1xi32> to vector<16x1xi32>
    %71 = vector.broadcast %70 : vector<16x1xi32> to vector<16x128xi32>
    %72 = arith.select %16, %71, %69 : vector<16x128xi1>, vector<16x128xi32>
    %73 = arith.cmpi eq, %72, %14 : vector<16x128xi32>
    %74 = arith.extui %73 : vector<16x128xi1> to vector<16x128xi32>
    %75 = arith.addi %57, %74 : vector<16x128xi32>
    %76 = vector.extract_strided_slice %11 {offsets = [0, 3], sizes = [16, 1], strides = [1, 1]} : vector<16x32xi32> to vector<16x1xi32>
    %77 = vector.extract_strided_slice %11 {offsets = [0, 11], sizes = [16, 1], strides = [1, 1]} : vector<16x32xi32> to vector<16x1xi32>
    %78 = vector.extract_strided_slice %11 {offsets = [0, 19], sizes = [16, 1], strides = [1, 1]} : vector<16x32xi32> to vector<16x1xi32>
    %79 = vector.extract_strided_slice %11 {offsets = [0, 27], sizes = [16, 1], strides = [1, 1]} : vector<16x32xi32> to vector<16x1xi32>
    %80 = vector.shape_cast %78 : vector<16x1xi32> to vector<16x1xi32>
    %81 = vector.broadcast %80 : vector<16x1xi32> to vector<16x128xi32>
    %82 = vector.shape_cast %79 : vector<16x1xi32> to vector<16x1xi32>
    %83 = vector.broadcast %82 : vector<16x1xi32> to vector<16x128xi32>
    %84 = arith.select %20, %81, %83 : vector<16x128xi1>, vector<16x128xi32>
    %85 = vector.shape_cast %77 : vector<16x1xi32> to vector<16x1xi32>
    %86 = vector.broadcast %85 : vector<16x1xi32> to vector<16x128xi32>
    %87 = arith.select %18, %86, %84 : vector<16x128xi1>, vector<16x128xi32>
    %88 = vector.shape_cast %76 : vector<16x1xi32> to vector<16x1xi32>
    %89 = vector.broadcast %88 : vector<16x1xi32> to vector<16x128xi32>
    %90 = arith.select %16, %89, %87 : vector<16x128xi1>, vector<16x128xi32>
    %91 = arith.cmpi eq, %90, %14 : vector<16x128xi32>
    %92 = arith.extui %91 : vector<16x128xi1> to vector<16x128xi32>
    %93 = arith.addi %75, %92 : vector<16x128xi32>
    %94 = vector.extract_strided_slice %11 {offsets = [0, 4], sizes = [16, 1], strides = [1, 1]} : vector<16x32xi32> to vector<16x1xi32>
    %95 = vector.extract_strided_slice %11 {offsets = [0, 12], sizes = [16, 1], strides = [1, 1]} : vector<16x32xi32> to vector<16x1xi32>
    %96 = vector.extract_strided_slice %11 {offsets = [0, 20], sizes = [16, 1], strides = [1, 1]} : vector<16x32xi32> to vector<16x1xi32>
    %97 = vector.extract_strided_slice %11 {offsets = [0, 28], sizes = [16, 1], strides = [1, 1]} : vector<16x32xi32> to vector<16x1xi32>
    %98 = vector.shape_cast %96 : vector<16x1xi32> to vector<16x1xi32>
    %99 = vector.broadcast %98 : vector<16x1xi32> to vector<16x128xi32>
    %100 = vector.shape_cast %97 : vector<16x1xi32> to vector<16x1xi32>
    %101 = vector.broadcast %100 : vector<16x1xi32> to vector<16x128xi32>
    %102 = arith.select %20, %99, %101 : vector<16x128xi1>, vector<16x128xi32>
    %103 = vector.shape_cast %95 : vector<16x1xi32> to vector<16x1xi32>
    %104 = vector.broadcast %103 : vector<16x1xi32> to vector<16x128xi32>
    %105 = arith.select %18, %104, %102 : vector<16x128xi1>, vector<16x128xi32>
    %106 = vector.shape_cast %94 : vector<16x1xi32> to vector<16x1xi32>
    %107 = vector.broadcast %106 : vector<16x1xi32> to vector<16x128xi32>
    %108 = arith.select %16, %107, %105 : vector<16x128xi1>, vector<16x128xi32>
    %109 = arith.cmpi eq, %108, %14 : vector<16x128xi32>
    %110 = arith.extui %109 : vector<16x128xi1> to vector<16x128xi32>
    %111 = arith.addi %93, %110 : vector<16x128xi32>
    %112 = vector.extract_strided_slice %11 {offsets = [0, 5], sizes = [16, 1], strides = [1, 1]} : vector<16x32xi32> to vector<16x1xi32>
    %113 = vector.extract_strided_slice %11 {offsets = [0, 13], sizes = [16, 1], strides = [1, 1]} : vector<16x32xi32> to vector<16x1xi32>
    %114 = vector.extract_strided_slice %11 {offsets = [0, 21], sizes = [16, 1], strides = [1, 1]} : vector<16x32xi32> to vector<16x1xi32>
    %115 = vector.extract_strided_slice %11 {offsets = [0, 29], sizes = [16, 1], strides = [1, 1]} : vector<16x32xi32> to vector<16x1xi32>
    %116 = vector.shape_cast %114 : vector<16x1xi32> to vector<16x1xi32>
    %117 = vector.broadcast %116 : vector<16x1xi32> to vector<16x128xi32>
    %118 = vector.shape_cast %115 : vector<16x1xi32> to vector<16x1xi32>
    %119 = vector.broadcast %118 : vector<16x1xi32> to vector<16x128xi32>
    %120 = arith.select %20, %117, %119 : vector<16x128xi1>, vector<16x128xi32>
    %121 = vector.shape_cast %113 : vector<16x1xi32> to vector<16x1xi32>
    %122 = vector.broadcast %121 : vector<16x1xi32> to vector<16x128xi32>
    %123 = arith.select %18, %122, %120 : vector<16x128xi1>, vector<16x128xi32>
    %124 = vector.shape_cast %112 : vector<16x1xi32> to vector<16x1xi32>
    %125 = vector.broadcast %124 : vector<16x1xi32> to vector<16x128xi32>
    %126 = arith.select %16, %125, %123 : vector<16x128xi1>, vector<16x128xi32>
    %127 = arith.cmpi eq, %126, %14 : vector<16x128xi32>
    %128 = arith.extui %127 : vector<16x128xi1> to vector<16x128xi32>
    %129 = arith.addi %111, %128 : vector<16x128xi32>
    %130 = vector.extract_strided_slice %11 {offsets = [0, 6], sizes = [16, 1], strides = [1, 1]} : vector<16x32xi32> to vector<16x1xi32>
    %131 = vector.extract_strided_slice %11 {offsets = [0, 14], sizes = [16, 1], strides = [1, 1]} : vector<16x32xi32> to vector<16x1xi32>
    %132 = vector.extract_strided_slice %11 {offsets = [0, 22], sizes = [16, 1], strides = [1, 1]} : vector<16x32xi32> to vector<16x1xi32>
    %133 = vector.extract_strided_slice %11 {offsets = [0, 30], sizes = [16, 1], strides = [1, 1]} : vector<16x32xi32> to vector<16x1xi32>
    %134 = vector.shape_cast %132 : vector<16x1xi32> to vector<16x1xi32>
    %135 = vector.broadcast %134 : vector<16x1xi32> to vector<16x128xi32>
    %136 = vector.shape_cast %133 : vector<16x1xi32> to vector<16x1xi32>
    %137 = vector.broadcast %136 : vector<16x1xi32> to vector<16x128xi32>
    %138 = arith.select %20, %135, %137 : vector<16x128xi1>, vector<16x128xi32>
    %139 = vector.shape_cast %131 : vector<16x1xi32> to vector<16x1xi32>
    %140 = vector.broadcast %139 : vector<16x1xi32> to vector<16x128xi32>
    %141 = arith.select %18, %140, %138 : vector<16x128xi1>, vector<16x128xi32>
    %142 = vector.shape_cast %130 : vector<16x1xi32> to vector<16x1xi32>
    %143 = vector.broadcast %142 : vector<16x1xi32> to vector<16x128xi32>
    %144 = arith.select %16, %143, %141 : vector<16x128xi1>, vector<16x128xi32>
    %145 = arith.cmpi eq, %144, %14 : vector<16x128xi32>
    %146 = arith.extui %145 : vector<16x128xi1> to vector<16x128xi32>
    %147 = arith.addi %129, %146 : vector<16x128xi32>
    %148 = vector.extract_strided_slice %11 {offsets = [0, 7], sizes = [16, 1], strides = [1, 1]} : vector<16x32xi32> to vector<16x1xi32>
    %149 = vector.extract_strided_slice %11 {offsets = [0, 15], sizes = [16, 1], strides = [1, 1]} : vector<16x32xi32> to vector<16x1xi32>
    %150 = vector.extract_strided_slice %11 {offsets = [0, 23], sizes = [16, 1], strides = [1, 1]} : vector<16x32xi32> to vector<16x1xi32>
    %151 = vector.extract_strided_slice %11 {offsets = [0, 31], sizes = [16, 1], strides = [1, 1]} : vector<16x32xi32> to vector<16x1xi32>
    %152 = vector.shape_cast %150 : vector<16x1xi32> to vector<16x1xi32>
    %153 = vector.broadcast %152 : vector<16x1xi32> to vector<16x128xi32>
    %154 = vector.shape_cast %151 : vector<16x1xi32> to vector<16x1xi32>
    %155 = vector.broadcast %154 : vector<16x1xi32> to vector<16x128xi32>
    %156 = arith.select %20, %153, %155 : vector<16x128xi1>, vector<16x128xi32>
    %157 = vector.shape_cast %149 : vector<16x1xi32> to vector<16x1xi32>
    %158 = vector.broadcast %157 : vector<16x1xi32> to vector<16x128xi32>
    %159 = arith.select %18, %158, %156 : vector<16x128xi1>, vector<16x128xi32>
    %160 = vector.shape_cast %148 : vector<16x1xi32> to vector<16x1xi32>
    %161 = vector.broadcast %160 : vector<16x1xi32> to vector<16x128xi32>
    %162 = arith.select %16, %161, %159 : vector<16x128xi1>, vector<16x128xi32>
    %163 = arith.cmpi eq, %162, %14 : vector<16x128xi32>
    %164 = arith.extui %163 : vector<16x128xi1> to vector<16x128xi32>
    %165 = arith.addi %147, %164 : vector<16x128xi32>
    %c64_i32_14 = arith.constant 64 : i32
    %166 = tpu.dynamic_rotate %165 by %c64_i32_14 dim 1 : vector<16x128xi32>, i32 -> vector<16x128xi32>
    %167 = arith.addi %165, %166 : vector<16x128xi32>
    %c32_i32_15 = arith.constant 32 : i32
    %168 = tpu.dynamic_rotate %167 by %c32_i32_15 dim 1 : vector<16x128xi32>, i32 -> vector<16x128xi32>
    %169 = arith.addi %167, %168 : vector<16x128xi32>
    %170 = vector.extract_strided_slice %169 {offsets = [0, 0], sizes = [16, 32], strides = [1, 1]} : vector<16x128xi32> to vector<16x32xi32>
    %171 = arith.sitofp %170 : vector<16x32xi32> to vector<16x32xbf16>
    %c0_16 = arith.constant 0 : index
    %c0_17 = arith.constant 0 : index
    %172 = vector.load %arg3[%c0_16, %c0_17] : memref<16x8xf32, #tpu.memory_space<vmem>>, vector<16x3xf32>
    %173 = arith.truncf %172 : vector<16x3xf32> to vector<16x3xbf16>
    %c0_18 = arith.constant 0 : index
    %c3_19 = arith.constant 3 : index
    %174 = vector.load %arg3[%c0_18, %c3_19] : memref<16x8xf32, #tpu.memory_space<vmem>>, vector<16x2xf32>
    %cst = arith.constant dense<0.000000e+00> : vector<16x32xf32>
    %175 = tpu.matmul %173, %6, %cst {dimension_numbers = #tpu.dot_dimension_numbers<[1], [0], [0], [1], [0, 0, 1, 1], [], []>} : vector<16x3xbf16>, vector<3x32xbf16>, vector<16x32xf32> -> vector<16x32xf32>
    %cst_20 = arith.constant dense<0.000000e+00> : vector<16x32xf32>
    %176 = tpu.matmul %171, %7, %cst_20 {dimension_numbers = #tpu.dot_dimension_numbers<[1], [0], [0], [1], [0, 0, 1, 1], [], []>} : vector<16x32xbf16>, vector<32x32xbf16>, vector<16x32xf32> -> vector<16x32xf32>
    %177 = arith.addf %175, %176 : vector<16x32xf32>
    %178 = vector.broadcast %0 : vector<1x32xf32> to vector<16x32xf32>
    %179 = arith.addf %177, %178 : vector<16x32xf32>
    %180 = math.tanh %179 : vector<16x32xf32>
    %181 = arith.truncf %180 : vector<16x32xf32> to vector<16x32xbf16>
    %cst_21 = arith.constant dense<0.000000e+00> : vector<16x32xf32>
    %182 = tpu.matmul %181, %8, %cst_21 {dimension_numbers = #tpu.dot_dimension_numbers<[1], [0], [0], [1], [0, 0, 1, 1], [], []>} : vector<16x32xbf16>, vector<32x32xbf16>, vector<16x32xf32> -> vector<16x32xf32>
    %183 = vector.broadcast %1 : vector<1x32xf32> to vector<16x32xf32>
    %184 = arith.addf %182, %183 : vector<16x32xf32>
    %185 = vector.extract_strided_slice %184 {offsets = [0, 0], sizes = [16, 16], strides = [1, 1]} : vector<16x32xf32> to vector<16x16xf32>
    %186 = vector.extract_strided_slice %184 {offsets = [0, 16], sizes = [16, 16], strides = [1, 1]} : vector<16x32xf32> to vector<16x16xf32>
    %187 = arith.truncf %185 : vector<16x16xf32> to vector<16x16xbf16>
    %cst_22 = arith.constant dense<0.000000e+00> : vector<16x32xf32>
    %188 = tpu.matmul %187, %9, %cst_22 {dimension_numbers = #tpu.dot_dimension_numbers<[1], [0], [0], [1], [0, 0, 1, 1], [], []>} : vector<16x16xbf16>, vector<16x32xbf16>, vector<16x32xf32> -> vector<16x32xf32>
    %189 = vector.broadcast %2 : vector<1x32xf32> to vector<16x32xf32>
    %190 = arith.addf %188, %189 : vector<16x32xf32>
    %191 = math.tanh %190 : vector<16x32xf32>
    %192 = arith.truncf %191 : vector<16x32xf32> to vector<16x32xbf16>
    %cst_23 = arith.constant dense<0.000000e+00> : vector<16x34xf32>
    %193 = tpu.matmul %192, %10, %cst_23 {dimension_numbers = #tpu.dot_dimension_numbers<[1], [0], [0], [1], [0, 0, 1, 1], [], []>} : vector<16x32xbf16>, vector<32x34xbf16>, vector<16x34xf32> -> vector<16x34xf32>
    %194 = vector.extract_strided_slice %193 {offsets = [0, 0], sizes = [16, 2], strides = [1, 1]} : vector<16x34xf32> to vector<16x2xf32>
    %195 = vector.broadcast %3 : vector<1x2xf32> to vector<16x2xf32>
    %196 = arith.addf %194, %195 : vector<16x2xf32>
    %197 = vector.extract_strided_slice %193 {offsets = [0, 2], sizes = [16, 16], strides = [1, 1]} : vector<16x34xf32> to vector<16x16xf32>
    %198 = vector.extract_strided_slice %193 {offsets = [0, 18], sizes = [16, 16], strides = [1, 1]} : vector<16x34xf32> to vector<16x16xf32>
    %cst_24 = arith.constant dense<0xFF800000> : vector<16xf32>
    %199 = vector.multi_reduction <maximumf>, %196, %cst_24 [1] : vector<16x2xf32> to vector<16xf32>
    %200 = vector.shape_cast %199 : vector<16xf32> to vector<16x1xf32>
    %201 = vector.broadcast %200 : vector<16x1xf32> to vector<16x2xf32>
    %202 = arith.subf %196, %201 : vector<16x2xf32>
    %203 = math.exp %202 : vector<16x2xf32>
    %cst_25 = arith.constant dense<0.000000e+00> : vector<16xf32>
    %204 = vector.multi_reduction <add>, %203, %cst_25 [1] : vector<16x2xf32> to vector<16xf32>
    %205 = vector.shape_cast %204 : vector<16xf32> to vector<16x1xf32>
    %206 = math.log %205 : vector<16x1xf32>
    %207 = vector.broadcast %206 : vector<16x1xf32> to vector<16x2xf32>
    %208 = arith.subf %202, %207 : vector<16x2xf32>
    %209 = arith.mulf %174, %208 : vector<16x2xf32>
    %cst_26 = arith.constant dense<0.000000e+00> : vector<16xf32>
    %210 = vector.multi_reduction <add>, %209, %cst_26 [1] : vector<16x2xf32> to vector<16xf32>
    %211 = vector.shape_cast %210 : vector<16xf32> to vector<16x1xf32>
    %cst_27 = arith.constant 0.000000e+00 : f32
    %212 = vector.broadcast %cst_27 : f32 to vector<16x1xf32>
    %213 = arith.subf %212, %211 : vector<16x1xf32>
    %214 = math.exp %186 : vector<16x16xf32>
    %215 = arith.mulf %185, %185 : vector<16x16xf32>
    %216 = arith.addf %214, %215 : vector<16x16xf32>
    %cst_28 = arith.constant 1.000000e+00 : f32
    %217 = vector.broadcast %cst_28 : f32 to vector<16x16xf32>
    %218 = arith.subf %216, %217 : vector<16x16xf32>
    %219 = arith.subf %218, %186 : vector<16x16xf32>
    %cst_29 = arith.constant dense<0.000000e+00> : vector<16xf32>
    %220 = vector.multi_reduction <add>, %219, %cst_29 [1] : vector<16x16xf32> to vector<16xf32>
    %221 = vector.shape_cast %220 : vector<16xf32> to vector<16x1xf32>
    %cst_30 = arith.constant 5.000000e-01 : f32
    %222 = vector.broadcast %cst_30 : f32 to vector<16x1xf32>
    %223 = arith.mulf %222, %221 : vector<16x1xf32>
    %224 = tpu.iota {dimensions = array<i32: 0>} : vector<8x1xi32>
    %cst_31 = arith.constant 0.000000e+00 : f32
    %225 = vector.broadcast %cst_31 : f32 to vector<1x1xf32>
    %c0_32 = arith.constant 0 : index
    %226 = memref.load %arg1[%c0_32] : memref<2xi32, #tpu.memory_space<smem>>
    %227 = vector.broadcast %226 : i32 to vector<8x1xi32>
    %228 = arith.cmpi eq, %224, %227 : vector<8x1xi32>
    %229 = arith.extui %228 : vector<8x1xi1> to vector<8x1xi32>
    %230 = arith.sitofp %229 : vector<8x1xi32> to vector<8x1xf32>
    %231 = vector.broadcast %226 : i32 to vector<8x1xi32>
    %232 = arith.cmpi slt, %224, %231 : vector<8x1xi32>
    %233 = arith.extui %232 : vector<8x1xi1> to vector<8x1xi32>
    %234 = arith.sitofp %233 : vector<8x1xi32> to vector<8x1xf32>
    %235 = vector.extract_strided_slice %198 {offsets = [0, 0], sizes = [8, 16], strides = [1, 1]} : vector<16x16xf32> to vector<8x16xf32>
    %236 = vector.broadcast %230 : vector<8x1xf32> to vector<8x16xf32>
    %237 = arith.mulf %235, %236 : vector<8x16xf32>
    %cst_33 = arith.constant dense<0.000000e+00> : vector<16xf32>
    %238 = vector.multi_reduction <add>, %237, %cst_33 [0] : vector<8x16xf32> to vector<16xf32>
    %239 = vector.shape_cast %238 : vector<16xf32> to vector<1x16xf32>
    %240 = vector.extract_strided_slice %197 {offsets = [0, 0], sizes = [8, 16], strides = [1, 1]} : vector<16x16xf32> to vector<8x16xf32>
    %241 = vector.broadcast %239 : vector<1x16xf32> to vector<8x16xf32>
    %242 = arith.addf %240, %241 : vector<8x16xf32>
    %243 = math.tanh %242 : vector<8x16xf32>
    %244 = vector.broadcast %4 : vector<1x16xf32> to vector<8x16xf32>
    %245 = arith.mulf %243, %244 : vector<8x16xf32>
    %cst_34 = arith.constant dense<0.000000e+00> : vector<8xf32>
    %246 = vector.multi_reduction <add>, %245, %cst_34 [1] : vector<8x16xf32> to vector<8xf32>
    %247 = vector.shape_cast %246 : vector<8xf32> to vector<8x1xf32>
    %cst_35 = arith.constant 0.000000e+00 : f32
    %248 = vector.broadcast %cst_35 : f32 to vector<8x1xf32>
    %249 = arith.cmpf ogt, %234, %248 : vector<8x1xf32>
    %cst_36 = arith.constant -1.000000e+30 : f32
    %250 = vector.broadcast %cst_36 : f32 to vector<8x1xf32>
    %251 = arith.select %249, %247, %250 : vector<8x1xi1>, vector<8x1xf32>
    %cst_37 = arith.constant dense<0xFF800000> : vector<1xf32>
    %252 = vector.multi_reduction <maximumf>, %251, %cst_37 [0] : vector<8x1xf32> to vector<1xf32>
    %253 = vector.shape_cast %252 : vector<1xf32> to vector<1x1xf32>
    %254 = vector.broadcast %253 : vector<1x1xf32> to vector<8x1xf32>
    %255 = arith.subf %251, %254 : vector<8x1xf32>
    %256 = math.exp %255 : vector<8x1xf32>
    %257 = arith.mulf %256, %234 : vector<8x1xf32>
    %cst_38 = arith.constant dense<0.000000e+00> : vector<1xf32>
    %258 = vector.multi_reduction <add>, %257, %cst_38 [0] : vector<8x1xf32> to vector<1xf32>
    %259 = vector.shape_cast %258 : vector<1xf32> to vector<1x1xf32>
    %cst_39 = arith.constant 9.99999971E-10 : f32
    %260 = vector.broadcast %cst_39 : f32 to vector<1x1xf32>
    %261 = arith.addf %259, %260 : vector<1x1xf32>
    %262 = vector.broadcast %261 : vector<1x1xf32> to vector<8x1xf32>
    %263 = arith.divf %257, %262 : vector<8x1xf32>
    %264 = vector.extract_strided_slice %213 {offsets = [0, 0], sizes = [8, 1], strides = [1, 1]} : vector<16x1xf32> to vector<8x1xf32>
    %265 = vector.extract_strided_slice %223 {offsets = [0, 0], sizes = [8, 1], strides = [1, 1]} : vector<16x1xf32> to vector<8x1xf32>
    %266 = arith.mulf %264, %230 : vector<8x1xf32>
    %cst_40 = arith.constant dense<0.000000e+00> : vector<1xf32>
    %267 = vector.multi_reduction <add>, %266, %cst_40 [0] : vector<8x1xf32> to vector<1xf32>
    %268 = vector.shape_cast %267 : vector<1xf32> to vector<1x1xf32>
    %269 = arith.mulf %263, %264 : vector<8x1xf32>
    %cst_41 = arith.constant dense<0.000000e+00> : vector<1xf32>
    %270 = vector.multi_reduction <add>, %269, %cst_41 [0] : vector<8x1xf32> to vector<1xf32>
    %271 = vector.shape_cast %270 : vector<1xf32> to vector<1x1xf32>
    %272 = arith.mulf %265, %234 : vector<8x1xf32>
    %cst_42 = arith.constant dense<0.000000e+00> : vector<1xf32>
    %273 = vector.multi_reduction <add>, %272, %cst_42 [0] : vector<8x1xf32> to vector<1xf32>
    %274 = vector.shape_cast %273 : vector<1xf32> to vector<1x1xf32>
    %cst_43 = arith.constant dense<0.000000e+00> : vector<1xf32>
    %275 = vector.multi_reduction <add>, %234, %cst_43 [0] : vector<8x1xf32> to vector<1xf32>
    %276 = vector.shape_cast %275 : vector<1xf32> to vector<1x1xf32>
    %cst_44 = arith.constant 9.99999971E-10 : f32
    %277 = vector.broadcast %cst_44 : f32 to vector<1x1xf32>
    %278 = arith.addf %276, %277 : vector<1x1xf32>
    %279 = arith.divf %274, %278 : vector<1x1xf32>
    %280 = arith.addf %225, %268 : vector<1x1xf32>
    %cst_45 = arith.constant 5.000000e-01 : f32
    %281 = vector.broadcast %cst_45 : f32 to vector<1x1xf32>
    %282 = arith.mulf %281, %271 : vector<1x1xf32>
    %283 = arith.addf %280, %282 : vector<1x1xf32>
    %284 = arith.mulf %5, %279 : vector<1x1xf32>
    %285 = arith.addf %283, %284 : vector<1x1xf32>
    %286 = vector.extract_strided_slice %208 {offsets = [0, 0], sizes = [8, 2], strides = [1, 1]} : vector<16x2xf32> to vector<8x2xf32>
    %287 = vector.broadcast %230 : vector<8x1xf32> to vector<8x2xf32>
    %288 = arith.mulf %286, %287 : vector<8x2xf32>
    %cst_46 = arith.constant dense<0.000000e+00> : vector<2xf32>
    %289 = vector.multi_reduction <add>, %288, %cst_46 [0] : vector<8x2xf32> to vector<2xf32>
    %290 = vector.shape_cast %289 : vector<2xf32> to vector<1x2xf32>
    %291 = math.exp %290 : vector<1x2xf32>
    %c1_47 = arith.constant 1 : index
    %292 = memref.load %arg1[%c1_47] : memref<2xi32, #tpu.memory_space<smem>>
    %293 = vector.broadcast %292 : i32 to vector<8x1xi32>
    %294 = arith.cmpi eq, %224, %293 : vector<8x1xi32>
    %295 = arith.extui %294 : vector<8x1xi1> to vector<8x1xi32>
    %296 = arith.sitofp %295 : vector<8x1xi32> to vector<8x1xf32>
    %297 = vector.broadcast %292 : i32 to vector<8x1xi32>
    %298 = arith.cmpi slt, %224, %297 : vector<8x1xi32>
    %299 = arith.extui %298 : vector<8x1xi1> to vector<8x1xi32>
    %300 = arith.sitofp %299 : vector<8x1xi32> to vector<8x1xf32>
    %301 = vector.extract_strided_slice %198 {offsets = [8, 0], sizes = [8, 16], strides = [1, 1]} : vector<16x16xf32> to vector<8x16xf32>
    %302 = vector.broadcast %296 : vector<8x1xf32> to vector<8x16xf32>
    %303 = arith.mulf %301, %302 : vector<8x16xf32>
    %cst_48 = arith.constant dense<0.000000e+00> : vector<16xf32>
    %304 = vector.multi_reduction <add>, %303, %cst_48 [0] : vector<8x16xf32> to vector<16xf32>
    %305 = vector.shape_cast %304 : vector<16xf32> to vector<1x16xf32>
    %306 = vector.extract_strided_slice %197 {offsets = [8, 0], sizes = [8, 16], strides = [1, 1]} : vector<16x16xf32> to vector<8x16xf32>
    %307 = vector.broadcast %305 : vector<1x16xf32> to vector<8x16xf32>
    %308 = arith.addf %306, %307 : vector<8x16xf32>
    %309 = math.tanh %308 : vector<8x16xf32>
    %310 = vector.broadcast %4 : vector<1x16xf32> to vector<8x16xf32>
    %311 = arith.mulf %309, %310 : vector<8x16xf32>
    %cst_49 = arith.constant dense<0.000000e+00> : vector<8xf32>
    %312 = vector.multi_reduction <add>, %311, %cst_49 [1] : vector<8x16xf32> to vector<8xf32>
    %313 = vector.shape_cast %312 : vector<8xf32> to vector<8x1xf32>
    %cst_50 = arith.constant 0.000000e+00 : f32
    %314 = vector.broadcast %cst_50 : f32 to vector<8x1xf32>
    %315 = arith.cmpf ogt, %300, %314 : vector<8x1xf32>
    %cst_51 = arith.constant -1.000000e+30 : f32
    %316 = vector.broadcast %cst_51 : f32 to vector<8x1xf32>
    %317 = arith.select %315, %313, %316 : vector<8x1xi1>, vector<8x1xf32>
    %cst_52 = arith.constant dense<0xFF800000> : vector<1xf32>
    %318 = vector.multi_reduction <maximumf>, %317, %cst_52 [0] : vector<8x1xf32> to vector<1xf32>
    %319 = vector.shape_cast %318 : vector<1xf32> to vector<1x1xf32>
    %320 = vector.broadcast %319 : vector<1x1xf32> to vector<8x1xf32>
    %321 = arith.subf %317, %320 : vector<8x1xf32>
    %322 = math.exp %321 : vector<8x1xf32>
    %323 = arith.mulf %322, %300 : vector<8x1xf32>
    %cst_53 = arith.constant dense<0.000000e+00> : vector<1xf32>
    %324 = vector.multi_reduction <add>, %323, %cst_53 [0] : vector<8x1xf32> to vector<1xf32>
    %325 = vector.shape_cast %324 : vector<1xf32> to vector<1x1xf32>
    %cst_54 = arith.constant 9.99999971E-10 : f32
    %326 = vector.broadcast %cst_54 : f32 to vector<1x1xf32>
    %327 = arith.addf %325, %326 : vector<1x1xf32>
    %328 = vector.broadcast %327 : vector<1x1xf32> to vector<8x1xf32>
    %329 = arith.divf %323, %328 : vector<8x1xf32>
    %330 = vector.extract_strided_slice %213 {offsets = [8, 0], sizes = [8, 1], strides = [1, 1]} : vector<16x1xf32> to vector<8x1xf32>
    %331 = vector.extract_strided_slice %223 {offsets = [8, 0], sizes = [8, 1], strides = [1, 1]} : vector<16x1xf32> to vector<8x1xf32>
    %332 = arith.mulf %330, %296 : vector<8x1xf32>
    %cst_55 = arith.constant dense<0.000000e+00> : vector<1xf32>
    %333 = vector.multi_reduction <add>, %332, %cst_55 [0] : vector<8x1xf32> to vector<1xf32>
    %334 = vector.shape_cast %333 : vector<1xf32> to vector<1x1xf32>
    %335 = arith.mulf %329, %330 : vector<8x1xf32>
    %cst_56 = arith.constant dense<0.000000e+00> : vector<1xf32>
    %336 = vector.multi_reduction <add>, %335, %cst_56 [0] : vector<8x1xf32> to vector<1xf32>
    %337 = vector.shape_cast %336 : vector<1xf32> to vector<1x1xf32>
    %338 = arith.mulf %331, %300 : vector<8x1xf32>
    %cst_57 = arith.constant dense<0.000000e+00> : vector<1xf32>
    %339 = vector.multi_reduction <add>, %338, %cst_57 [0] : vector<8x1xf32> to vector<1xf32>
    %340 = vector.shape_cast %339 : vector<1xf32> to vector<1x1xf32>
    %cst_58 = arith.constant dense<0.000000e+00> : vector<1xf32>
    %341 = vector.multi_reduction <add>, %300, %cst_58 [0] : vector<8x1xf32> to vector<1xf32>
    %342 = vector.shape_cast %341 : vector<1xf32> to vector<1x1xf32>
    %cst_59 = arith.constant 9.99999971E-10 : f32
    %343 = vector.broadcast %cst_59 : f32 to vector<1x1xf32>
    %344 = arith.addf %342, %343 : vector<1x1xf32>
    %345 = arith.divf %340, %344 : vector<1x1xf32>
    %346 = arith.addf %285, %334 : vector<1x1xf32>
    %cst_60 = arith.constant 5.000000e-01 : f32
    %347 = vector.broadcast %cst_60 : f32 to vector<1x1xf32>
    %348 = arith.mulf %347, %337 : vector<1x1xf32>
    %349 = arith.addf %346, %348 : vector<1x1xf32>
    %350 = arith.mulf %5, %345 : vector<1x1xf32>
    %351 = arith.addf %349, %350 : vector<1x1xf32>
    %352 = vector.extract_strided_slice %208 {offsets = [8, 0], sizes = [8, 2], strides = [1, 1]} : vector<16x2xf32> to vector<8x2xf32>
    %353 = vector.broadcast %296 : vector<8x1xf32> to vector<8x2xf32>
    %354 = arith.mulf %352, %353 : vector<8x2xf32>
    %cst_61 = arith.constant dense<0.000000e+00> : vector<2xf32>
    %355 = vector.multi_reduction <add>, %354, %cst_61 [0] : vector<8x2xf32> to vector<2xf32>
    %356 = vector.shape_cast %355 : vector<2xf32> to vector<1x2xf32>
    %357 = math.exp %356 : vector<1x2xf32>
    %358 = tpu.concatenate %291, %357 in 0 : vector<1x2xf32>, vector<1x2xf32> -> vector<2x2xf32>
    %c0_62 = arith.constant 0 : index
    %c0_63 = arith.constant 0 : index
    %359 = vector.load %arg6[%c0_62, %c0_63] : memref<2x2xf32, #tpu.memory_space<vmem>>, vector<2x2xf32>
    tpu.vector_store %arg6[%c0_62, %c0_63], %358 {strides = array<i32>} : memref<2x2xf32, #tpu.memory_space<vmem>>, vector<2x2xf32>,
    %cst_64 = arith.constant 5.000000e-01 : f32
    %360 = vector.broadcast %cst_64 : f32 to vector<1x1xf32>
    %361 = arith.mulf %351, %360 : vector<1x1xf32>
    %c0_65 = arith.constant 0 : index
    %c0_66 = arith.constant 0 : index
    %362 = vector.load %arg7[%c0_65, %c0_66] : memref<1x1xf32, #tpu.memory_space<vmem>>, vector<1x1xf32>
    tpu.vector_store %arg7[%c0_65, %c0_66], %361 {strides = array<i32>} : memref<1x1xf32, #tpu.memory_space<vmem>>, vector<1x1xf32>,
    return
  }
  func.func @transform_0(%arg0: i32, %arg1: memref<2xi32, #tpu.memory_space<smem>>) -> (i32, i32) {
    %c0_i32 = arith.constant 0 : i32
    %c0_i32_0 = arith.constant 0 : i32
    %c0_i32_1 = arith.constant 0 : i32
    return %c0_i32, %c0_i32_0 : i32, i32
  }
  func.func @transform_1(%arg0: i32, %arg1: memref<2xi32, #tpu.memory_space<smem>>) -> (i32, i32) {
    %c0_i32 = arith.constant 0 : i32
    %c0_i32_0 = arith.constant 0 : i32
    %c0_i32_1 = arith.constant 0 : i32
    return %c0_i32, %c0_i32_0 : i32, i32
  }
  func.func @transform_2(%arg0: i32, %arg1: memref<2xi32, #tpu.memory_space<smem>>) -> (i32, i32) {
    %c0_i32 = arith.constant 0 : i32
    %c0_i32_0 = arith.constant 0 : i32
    %c0_i32_1 = arith.constant 0 : i32
    return %c0_i32, %c0_i32_0 : i32, i32
  }
  func.func @transform_3(%arg0: i32, %arg1: memref<2xi32, #tpu.memory_space<smem>>) -> (i32, i32) {
    %c0_i32 = arith.constant 0 : i32
    %c0_i32_0 = arith.constant 0 : i32
    %c0_i32_1 = arith.constant 0 : i32
    return %c0_i32, %c0_i32_0 : i32, i32
  }
  func.func @transform_4(%arg0: i32, %arg1: memref<2xi32, #tpu.memory_space<smem>>) -> (i32, i32) {
    %c0_i32 = arith.constant 0 : i32
    %c0_i32_0 = arith.constant 0 : i32
    %c0_i32_1 = arith.constant 0 : i32
    return %c0_i32, %c0_i32_0 : i32, i32
  }
  func.func @transform_5(%arg0: i32, %arg1: memref<2xi32, #tpu.memory_space<smem>>) -> (i32, i32) {
    %c0_i32 = arith.constant 0 : i32
    %c0_i32_0 = arith.constant 0 : i32
    %c0_i32_1 = arith.constant 0 : i32
    return %c0_i32, %c0_i32_0 : i32, i32
  }
}

</mosaic_0001>

<llo_original>
// kernel: tpu_custom_call.1
$region0: #{tpu_custom_call.1}
  #allocation0 [shape = 'u32[]', space=smem, size = 0x4, offset = 0x4, fixed_abs, tag = 'smem constant byte address 0x4 - core index']
  #allocation1 [shape = 'u32[144,128]{1,0:T(1,128)}', space=vmem, size = 0x12000, scoped, tag = 'internal scratch']
  #allocation2 [shape = 's32[1]{0}', space=sflag, size = 0x4, scoped, tag = 'scoped memory for tpu_custom_call.1']
  #allocation3 [shape = 'u8[512]{0}', space=smem, size = 0x200, scoped, tag = 'prefetched SMEM operand 0']
  %s0 = inlined_call_operand.vmem [shape: s32[2], index: 0, kind: input, shape index: {}]
  %s1 = inlined_call_operand.vmem [shape: s32[16,32], index: 1, kind: input, shape index: {}]
  %s2 = inlined_call_operand.vmem [shape: f32[16,8], index: 2, kind: input, shape index: {}]
  %s3 = inlined_call_operand.vmem [shape: bf16[128,64], index: 3, kind: input, shape index: {}]
  %s4 = inlined_call_operand.vmem [shape: f32[8,32], index: 4, kind: input, shape index: {}]
  %s5 = inlined_call_operand.hbm [shape: f32[2,2], index: 5, kind: output, shape index: {0}]
  %s6 = inlined_call_operand.hbm [shape: f32[1,1], index: 6, kind: output, shape index: {1}]
  %7 = xla_tuple %s5, %s6
  %s8 = sld [smem:[#allocation0]]
  $region34: #{tpu_custom_call.1} parent=0
    _
  %s10 = ssub.s32 1, %s8
  %s11 = scalar_select 0, %s10, %s8
  %s12 = sshll.u32 %s0, 4
  %s13 = int_to_ptr.vmem [resolvable:$true] %s12
  %15 = dma.vmem_to_smem %s13, 16, [#allocation3], [#allocation2]
  %16 = dma.done [#allocation2], 16
  %17 = sfence
  $region1: #{tpu_custom_call.1} parent=0
    #allocation4 [shape = 'u8[1024]{0}', space=vmem, size = 0x400, scoped, tag = 'output window, operand 0, single buffered']
    #allocation5 [shape = 's32[1]{0}', space=sflag, size = 0x4, scoped, tag = 'scoped memory for tpu_custom_call.1']
    #allocation6 [shape = 'u8[512]{0}', space=vmem, size = 0x400, scoped, tag = 'output window, operand 1, single buffered']
    #allocation7 [shape = 's32[1]{0}', space=sflag, size = 0x4, scoped, tag = 'scoped memory for tpu_custom_call.1']
    %18 = vsyncpa [#allocation5], 0
    %19 = vsyncpa [#allocation7], 0
    // Predicated region
    $region2: #{tpu_custom_call.1} parent=1 // pred_check
      _
    $region3: #{tpu_custom_call.1} parent=1 // pred_check_branch
      %21 = sbr.rel (0) target = $region5
    $region4: #{tpu_custom_call.1} parent=1 // pred_region
      _
    $region5: #{tpu_custom_call.1} parent=1 // pred_fallthru
      _
    // Predicated region
    $region6: #{tpu_custom_call.1} parent=1 // pred_check
      _
    $region7: #{tpu_custom_call.1} parent=1 // pred_check_branch
      %23 = sbr.rel (0) target = $region9
    $region8: #{tpu_custom_call.1} parent=1 // pred_region
      _
    $region9: #{tpu_custom_call.1} parent=1 // pred_fallthru
      _
    // Predicated region
    $region10: #{tpu_custom_call.1} parent=1 // pred_check
      _
    $region11: #{tpu_custom_call.1} parent=1 // pred_check_branch
      %25 = sbr.rel (0) target = $region13
    $region12: #{tpu_custom_call.1} parent=1 // pred_region
      _
    $region13: #{tpu_custom_call.1} parent=1 // pred_fallthru
      _
    // Predicated region
    $region14: #{tpu_custom_call.1} parent=1 // pred_check
      _
    $region15: #{tpu_custom_call.1} parent=1 // pred_check_branch
      %27 = sbr.rel (0) target = $region17
    $region16: #{tpu_custom_call.1} parent=1 // pred_region
      _
    $region17: #{tpu_custom_call.1} parent=1 // pred_fallthru
      _
    %v29 = vld [vmem:[%s4] sm:$0x1]
    %v30 = vld [vmem:[%s4 + $0x1] sm:$0x1]
    %v31 = vld [vmem:[%s4 + $0x2] sm:$0x1]
    %v32 = vld [vmem:[%s4 + $0x3] sm:$0x1]
    %v33 = vld [vmem:[%s4 + $0x4] sm:$0x1]
    %v34 = vld [vmem:[%s4 + $0x5] sm:$0x1]
    %v35 = vld [vmem:[%s3] sm:$0x3]
    %v36 = vld [vmem:[%s3 + $0x8] sm:$0xf]
    %v37 = vld [vmem:[%s3 + $0xc] sm:$0xf]
    %v38 = vld [vmem:[%s3 + $0x10] sm:$0xf]
    %v39 = vld [vmem:[%s3 + $0x14] sm:$0xf]
    %v40 = vld [vmem:[%s3 + $0x18] sm:$0xf]
    %v41 = vld [vmem:[%s3 + $0x1c] sm:$0xf]
    %v42 = vld [vmem:[%s3 + $0x20] sm:$0xf]
    %v43 = vld [vmem:[%s3 + $0x24] sm:$0xf]
    %v44 = vld [vmem:[%s3 + $0x28] sm:$0xf]
    %v45 = vld [vmem:[%s3 + $0x2c] sm:$0xf]
    %v46 = vld [vmem:[%s3 + $0x30] sm:$0xf]
    %v47 = vld [vmem:[%s3 + $0x34] sm:$0xf]
    %v48 = vld [vmem:[%s3 + $0x38] sm:$0xf]
    %v49 = vld [vmem:[%s3 + $0x3c] sm:$0xf]
    %v50 = vld [vmem:[%s1] sm:$0xff]
    %v51 = vld [vmem:[%s1 + $0x8] sm:$0xff]
    %v52 = vlaneseq
    %v53 = vand.u32 %v52, 127
    %v54 = vand.u32 %v53, 31
    %vm55 = vcmp.lt.s32.totalorder %v53, 32
    %vm56 = vcmp.lt.s32.totalorder %v53, 64
    %vm57 = vcmp.lt.s32.totalorder %v53, 96
    %58 = vset.pattern.permute.xlu0 16
    %59 = vperm.xlu0 %58, %v50
    %v60 = vpop.permute.xlu0 %59
    %61 = vset.pattern.permute.xlu0 16
    %62 = vperm.xlu0 %61, %v51
    %v63 = vpop.permute.xlu0 %62
    %64 = vset.pattern.permute.xlu0 24
    %65 = vperm.xlu0 %64, %v50
    %v66 = vpop.permute.xlu0 %65
    %67 = vset.pattern.permute.xlu0 24
    %68 = vperm.xlu0 %67, %v51
    %v69 = vpop.permute.xlu0 %68
    %v70 = vsel %vm57, %v60, %v66
    %v71 = vsel %vm57, %v63, %v69
    %72 = vset.pattern.permute.xlu0 8
    %73 = vperm.xlu0 %72, %v50
    %v74 = vpop.permute.xlu0 %73
    %75 = vset.pattern.permute.xlu0 8
    %76 = vperm.xlu0 %75, %v51
    %v77 = vpop.permute.xlu0 %76
    %v78 = vsel %vm56, %v74, %v70
    %v79 = vsel %vm56, %v77, %v71
    %80 = vset.pattern.permute.xlu0 0
    %81 = vperm.xlu0 %80, %v50
    %v82 = vpop.permute.xlu0 %81
    %83 = vset.pattern.permute.xlu0 0
    %84 = vperm.xlu0 %83, %v51
    %v85 = vpop.permute.xlu0 %84
    %v86 = vsel %vm55, %v82, %v78
    %v87 = vsel %vm55, %v85, %v79
    %vm88 = vcmp.eq.s32.totalorder %v86, %v54
    %vm89 = vcmp.eq.s32.totalorder %v87, %v54
    %v90 = vsel %vm88, 1, 0
    %v91 = vsel %vm89, 1, 0
    %92 = vset.pattern.permute.xlu0 17
    %93 = vperm.xlu0 %92, %v50
    %v94 = vpop.permute.xlu0 %93
    %95 = vset.pattern.permute.xlu0 17
    %96 = vperm.xlu0 %95, %v51
    %v97 = vpop.permute.xlu0 %96
    %98 = vset.pattern.permute.xlu0 25
    %99 = vperm.xlu0 %98, %v50
    %v100 = vpop.permute.xlu0 %99
    %101 = vset.pattern.permute.xlu0 25
    %102 = vperm.xlu0 %101, %v51
    %v103 = vpop.permute.xlu0 %102
    %v104 = vsel %vm57, %v94, %v100
    %v105 = vsel %vm57, %v97, %v103
    %106 = vset.pattern.permute.xlu0 9
    %107 = vperm.xlu0 %106, %v50
    %v108 = vpop.permute.xlu0 %107
    %109 = vset.pattern.permute.xlu0 9
    %110 = vperm.xlu0 %109, %v51
    %v111 = vpop.permute.xlu0 %110
    %v112 = vsel %vm56, %v108, %v104
    %v113 = vsel %vm56, %v111, %v105
    %114 = vset.pattern.permute.xlu0 1
    %115 = vperm.xlu0 %114, %v50
    %v116 = vpop.permute.xlu0 %115
    %117 = vset.pattern.permute.xlu0 1
    %118 = vperm.xlu0 %117, %v51
    %v119 = vpop.permute.xlu0 %118
    %v120 = vsel %vm55, %v116, %v112
    %v121 = vsel %vm55, %v119, %v113
    %vm122 = vcmp.eq.s32.totalorder %v120, %v54
    %vm123 = vcmp.eq.s32.totalorder %v121, %v54
    %v124 = vsel %vm122, 1, 0
    %v125 = vsel %vm123, 1, 0
    %v126 = vadd.s32 %v90, %v124
    %v127 = vadd.s32 %v91, %v125
    %128 = vset.pattern.permute.xlu0 18
    %129 = vperm.xlu0 %128, %v50
    %v130 = vpop.permute.xlu0 %129
    %131 = vset.pattern.permute.xlu0 18
    %132 = vperm.xlu0 %131, %v51
    %v133 = vpop.permute.xlu0 %132
    %134 = vset.pattern.permute.xlu0 26
    %135 = vperm.xlu0 %134, %v50
    %v136 = vpop.permute.xlu0 %135
    %137 = vset.pattern.permute.xlu0 26
    %138 = vperm.xlu0 %137, %v51
    %v139 = vpop.permute.xlu0 %138
    %v140 = vsel %vm57, %v130, %v136
    %v141 = vsel %vm57, %v133, %v139
    %142 = vset.pattern.permute.xlu0 10
    %143 = vperm.xlu0 %142, %v50
    %v144 = vpop.permute.xlu0 %143
    %145 = vset.pattern.permute.xlu0 10
    %146 = vperm.xlu0 %145, %v51
    %v147 = vpop.permute.xlu0 %146
    %v148 = vsel %vm56, %v144, %v140
    %v149 = vsel %vm56, %v147, %v141
    %150 = vset.pattern.permute.xlu0 2
    %151 = vperm.xlu0 %150, %v50
    %v152 = vpop.permute.xlu0 %151
    %153 = vset.pattern.permute.xlu0 2
    %154 = vperm.xlu0 %153, %v51
    %v155 = vpop.permute.xlu0 %154
    %v156 = vsel %vm55, %v152, %v148
    %v157 = vsel %vm55, %v155, %v149
    %vm158 = vcmp.eq.s32.totalorder %v156, %v54
    %vm159 = vcmp.eq.s32.totalorder %v157, %v54
    %v160 = vsel %vm158, 1, 0
    %v161 = vsel %vm159, 1, 0
    %v162 = vadd.s32 %v126, %v160
    %v163 = vadd.s32 %v127, %v161
    %164 = vset.pattern.permute.xlu0 19
    %165 = vperm.xlu0 %164, %v50
    %v166 = vpop.permute.xlu0 %165
    %167 = vset.pattern.permute.xlu0 19
    %168 = vperm.xlu0 %167, %v51
    %v169 = vpop.permute.xlu0 %168
    %170 = vset.pattern.permute.xlu0 27
    %171 = vperm.xlu0 %170, %v50
    %v172 = vpop.permute.xlu0 %171
    %173 = vset.pattern.permute.xlu0 27
    %174 = vperm.xlu0 %173, %v51
    %v175 = vpop.permute.xlu0 %174
    %v176 = vsel %vm57, %v166, %v172
    %v177 = vsel %vm57, %v169, %v175
    %178 = vset.pattern.permute.xlu0 11
    %179 = vperm.xlu0 %178, %v50
    %v180 = vpop.permute.xlu0 %179
    %181 = vset.pattern.permute.xlu0 11
    %182 = vperm.xlu0 %181, %v51
    %v183 = vpop.permute.xlu0 %182
    %v184 = vsel %vm56, %v180, %v176
    %v185 = vsel %vm56, %v183, %v177
    %186 = vset.pattern.permute.xlu0 3
    %187 = vperm.xlu0 %186, %v50
    %v188 = vpop.permute.xlu0 %187
    %189 = vset.pattern.permute.xlu0 3
    %190 = vperm.xlu0 %189, %v51
    %v191 = vpop.permute.xlu0 %190
    %v192 = vsel %vm55, %v188, %v184
    %v193 = vsel %vm55, %v191, %v185
    %vm194 = vcmp.eq.s32.totalorder %v192, %v54
    %vm195 = vcmp.eq.s32.totalorder %v193, %v54
    %v196 = vsel %vm194, 1, 0
    %v197 = vsel %vm195, 1, 0
    %v198 = vadd.s32 %v162, %v196
    %v199 = vadd.s32 %v163, %v197
    %200 = vset.pattern.permute.xlu0 20
    %201 = vperm.xlu0 %200, %v50
    %v202 = vpop.permute.xlu0 %201
    %203 = vset.pattern.permute.xlu0 20
    %204 = vperm.xlu0 %203, %v51
    %v205 = vpop.permute.xlu0 %204
    %206 = vset.pattern.permute.xlu0 28
    %207 = vperm.xlu0 %206, %v50
    %v208 = vpop.permute.xlu0 %207
    %209 = vset.pattern.permute.xlu0 28
    %210 = vperm.xlu0 %209, %v51
    %v211 = vpop.permute.xlu0 %210
    %v212 = vsel %vm57, %v202, %v208
    %v213 = vsel %vm57, %v205, %v211
    %214 = vset.pattern.permute.xlu0 12
    %215 = vperm.xlu0 %214, %v50
    %v216 = vpop.permute.xlu0 %215
    %217 = vset.pattern.permute.xlu0 12
    %218 = vperm.xlu0 %217, %v51
    %v219 = vpop.permute.xlu0 %218
    %v220 = vsel %vm56, %v216, %v212
    %v221 = vsel %vm56, %v219, %v213
    %222 = vset.pattern.permute.xlu0 4
    %223 = vperm.xlu0 %222, %v50
    %v224 = vpop.permute.xlu0 %223
    %225 = vset.pattern.permute.xlu0 4
    %226 = vperm.xlu0 %225, %v51
    %v227 = vpop.permute.xlu0 %226
    %v228 = vsel %vm55, %v224, %v220
    %v229 = vsel %vm55, %v227, %v221
    %vm230 = vcmp.eq.s32.totalorder %v228, %v54
    %vm231 = vcmp.eq.s32.totalorder %v229, %v54
    %v232 = vsel %vm230, 1, 0
    %v233 = vsel %vm231, 1, 0
    %v234 = vadd.s32 %v198, %v232
    %v235 = vadd.s32 %v199, %v233
    %236 = vset.pattern.permute.xlu0 21
    %237 = vperm.xlu0 %236, %v50
    %v238 = vpop.permute.xlu0 %237
    %239 = vset.pattern.permute.xlu0 21
    %240 = vperm.xlu0 %239, %v51
    %v241 = vpop.permute.xlu0 %240
    %242 = vset.pattern.permute.xlu0 29
    %243 = vperm.xlu0 %242, %v50
    %v244 = vpop.permute.xlu0 %243
    %245 = vset.pattern.permute.xlu0 29
    %246 = vperm.xlu0 %245, %v51
    %v247 = vpop.permute.xlu0 %246
    %v248 = vsel %vm57, %v238, %v244
    %v249 = vsel %vm57, %v241, %v247
    %250 = vset.pattern.permute.xlu0 13
    %251 = vperm.xlu0 %250, %v50
    %v252 = vpop.permute.xlu0 %251
    %253 = vset.pattern.permute.xlu0 13
    %254 = vperm.xlu0 %253, %v51
    %v255 = vpop.permute.xlu0 %254
    %v256 = vsel %vm56, %v252, %v248
    %v257 = vsel %vm56, %v255, %v249
    %258 = vset.pattern.permute.xlu0 5
    %259 = vperm.xlu0 %258, %v50
    %v260 = vpop.permute.xlu0 %259
    %261 = vset.pattern.permute.xlu0 5
    %262 = vperm.xlu0 %261, %v51
    %v263 = vpop.permute.xlu0 %262
    %v264 = vsel %vm55, %v260, %v256
    %v265 = vsel %vm55, %v263, %v257
    %vm266 = vcmp.eq.s32.totalorder %v264, %v54
    %vm267 = vcmp.eq.s32.totalorder %v265, %v54
    %v268 = vsel %vm266, 1, 0
    %v269 = vsel %vm267, 1, 0
    %v270 = vadd.s32 %v234, %v268
    %v271 = vadd.s32 %v235, %v269
    %272 = vset.pattern.permute.xlu0 22
    %273 = vperm.xlu0 %272, %v50
    %v274 = vpop.permute.xlu0 %273
    %275 = vset.pattern.permute.xlu0 22
    %276 = vperm.xlu0 %275, %v51
    %v277 = vpop.permute.xlu0 %276
    %278 = vset.pattern.permute.xlu0 30
    %279 = vperm.xlu0 %278, %v50
    %v280 = vpop.permute.xlu0 %279
    %281 = vset.pattern.permute.xlu0 30
    %282 = vperm.xlu0 %281, %v51
    %v283 = vpop.permute.xlu0 %282
    %v284 = vsel %vm57, %v274, %v280
    %v285 = vsel %vm57, %v277, %v283
    %286 = vset.pattern.permute.xlu0 14
    %287 = vperm.xlu0 %286, %v50
    %v288 = vpop.permute.xlu0 %287
    %289 = vset.pattern.permute.xlu0 14
    %290 = vperm.xlu0 %289, %v51
    %v291 = vpop.permute.xlu0 %290
    %v292 = vsel %vm56, %v288, %v284
    %v293 = vsel %vm56, %v291, %v285
    %294 = vset.pattern.permute.xlu0 6
    %295 = vperm.xlu0 %294, %v50
    %v296 = vpop.permute.xlu0 %295
    %297 = vset.pattern.permute.xlu0 6
    %298 = vperm.xlu0 %297, %v51
    %v299 = vpop.permute.xlu0 %298
    %v300 = vsel %vm55, %v296, %v292
    %v301 = vsel %vm55, %v299, %v293
    %vm302 = vcmp.eq.s32.totalorder %v300, %v54
    %vm303 = vcmp.eq.s32.totalorder %v301, %v54
    %v304 = vsel %vm302, 1, 0
    %v305 = vsel %vm303, 1, 0
    %v306 = vadd.s32 %v270, %v304
    %v307 = vadd.s32 %v271, %v305
    %308 = vset.pattern.permute.xlu0 23
    %309 = vperm.xlu0 %308, %v50
    %v310 = vpop.permute.xlu0 %309
    %311 = vset.pattern.permute.xlu0 23
    %312 = vperm.xlu0 %311, %v51
    %v313 = vpop.permute.xlu0 %312
    %314 = vset.pattern.permute.xlu0 31
    %315 = vperm.xlu0 %314, %v50
    %v316 = vpop.permute.xlu0 %315
    %317 = vset.pattern.permute.xlu0 31
    %318 = vperm.xlu0 %317, %v51
    %v319 = vpop.permute.xlu0 %318
    %v320 = vsel %vm57, %v310, %v316
    %v321 = vsel %vm57, %v313, %v319
    %322 = vset.pattern.permute.xlu0 15
    %323 = vperm.xlu0 %322, %v50
    %v324 = vpop.permute.xlu0 %323
    %325 = vset.pattern.permute.xlu0 15
    %326 = vperm.xlu0 %325, %v51
    %v327 = vpop.permute.xlu0 %326
    %v328 = vsel %vm56, %v324, %v320
    %v329 = vsel %vm56, %v327, %v321
    %330 = vset.pattern.permute.xlu0 7
    %331 = vperm.xlu0 %330, %v50
    %v332 = vpop.permute.xlu0 %331
    %333 = vset.pattern.permute.xlu0 7
    %334 = vperm.xlu0 %333, %v51
    %v335 = vpop.permute.xlu0 %334
    %v336 = vsel %vm55, %v332, %v328
    %v337 = vsel %vm55, %v335, %v329
    %vm338 = vcmp.eq.s32.totalorder %v336, %v54
    %vm339 = vcmp.eq.s32.totalorder %v337, %v54
    %v340 = vsel %vm338, 1, 0
    %v341 = vsel %vm339, 1, 0
    %v342 = vadd.s32 %v306, %v340
    %v343 = vadd.s32 %v307, %v341
    %344 = vrot.lane.b32.xlu0 %v342, 64
    %v345 = vpop.permute.xlu0 %344
    %346 = vrot.lane.b32.xlu0 %v343, 64
    %v347 = vpop.permute.xlu0 %346
    %v348 = vadd.s32 %v342, %v345
    %v349 = vadd.s32 %v343, %v347
    %350 = vrot.lane.b32.xlu0 %v348, 32
    %v351 = vpop.permute.xlu0 %350
    %352 = vrot.lane.b32.xlu0 %v349, 32
    %v353 = vpop.permute.xlu0 %352
    %v354 = vadd.s32 %v348, %v351
    %v355 = vadd.s32 %v349, %v353
    %v356 = vcvt.s32.f32 %v354
    %v357 = vcvt.s32.f32 %v355
    %v358 = vpack.c.bf16 %v357, %v356
    %v359 = vld [vmem:[%s2] sm:$0xff]
    %v360 = vld [vmem:[%s2 + $0x8] sm:$0xff]
    %v361 = vpack.c.bf16 %v360, %v359
    %v366 = vunpack.c.l.b16 %v36
    %v367 = vunpack.c.l.b16 %v37
    %v368 = vunpack.c.l.b16 %v38
    %v369 = vunpack.c.l.b16 %v39
    %v370 = vpack.c.b16 %v367, %v366
    %v371 = vpack.c.b16 %v369, %v368
    %vm374 = vcmask 261120
    %v376 = vsel %vm374, %v358, 0
    %378 = vmatprep.subr.bf16.mxu0 0
    %379 = vmatpush1.bf16.msra.mxu0 %v370
    %380 = vmatprep.subr.bf16.mxu0 0
    %381 = vmatpush1.bf16.msra.mxu0 %v371
    %382 = vmatprep.subr.bf16.mxu0 0
    %383 = vmatpush1.bf16.msra.mxu0 0
    %384 = vmatprep.subr.bf16.mxu0 0
    %385 = vmatpush1.bf16.msra.mxu0 0
    %386 = vmatprep.subr.bf16.mxu0 0
    %387 = vmatpush1.bf16.msra.mxu0 0
    %388 = vmatprep.subr.bf16.mxu0 0
    %389 = vmatpush1.bf16.msra.mxu0 0
    %390 = vmatprep.subr.bf16.mxu0 0
    %391 = vmatpush1.bf16.msra.mxu0 0
    %392 = vmatprep.subr.bf16.mxu0 0
    %393 = vmatpush1.bf16.msra.mxu0 0
    %394 = vmatprep.subr.bf16.mxu0 0
    %395 = vmatpush1.bf16.msra.mxu0 0
    %396 = vmatprep.subr.bf16.mxu0 0
    %397 = vmatpush1.bf16.msra.mxu0 0
    %398 = vmatprep.subr.bf16.mxu0 0
    %399 = vmatpush1.bf16.msra.mxu0 0
    %400 = vmatprep.subr.bf16.mxu0 0
    %401 = vmatpush1.bf16.msra.mxu0 0
    %402 = vmatprep.subr.bf16.mxu0 0
    %403 = vmatpush1.bf16.msra.mxu0 0
    %404 = vmatprep.subr.bf16.mxu0 0
    %405 = vmatpush1.bf16.msra.mxu0 0
    %406 = vmatprep.subr.bf16.mxu0 0
    %407 = vmatpush1.bf16.msra.mxu0 0
    %408 = vmatprep.subr.bf16.mxu0 0
    %409 = vmatpush1.bf16.msra.mxu0 0
    %410 = vmatprep.mubr.bf16.mxu0 0
    %411 = vmatmul.mubr.bf16.gmra.mrb[0].mxu0 %v376
    %v412 = vpop.f32.mrb[0].mxu0
    %v413 = vadd.f32 0.0, %v412
    %v414 = vpop.f32.mrb[0].mxu0
    %v415 = vpop.f32.mrb[0].mxu0
    %v416 = vadd.f32 0.0, %v415
    %v417 = vpop.f32.mrb[0].mxu0
    %418 = vdwg.mxu0
    %vm419 = vcmask 23552
    %v421 = vsel %vm419, %v361, 0
    %vm423 = vcmask 1040384
    %vm424 = vcmask 1041408
    %v425 = vsel %vm423, 4294967295, 65535
    %v426 = vsel %vm424, %v425, 0
    %v428 = vand.u32 %v35, %v426
    %430 = vmatprep.subr.bf16.mxu0 0
    %431 = vmatpush1.bf16.msra.mxu0 %v428
    %432 = vmatprep.subr.bf16.mxu0 0
    %433 = vmatpush1.bf16.msra.mxu0 0
    %434 = vmatprep.subr.bf16.mxu0 0
    %435 = vmatpush1.bf16.msra.mxu0 0
    %436 = vmatprep.subr.bf16.mxu0 0
    %437 = vmatpush1.bf16.msra.mxu0 0
    %438 = vmatprep.subr.bf16.mxu0 0
    %439 = vmatpush1.bf16.msra.mxu0 0
    %440 = vmatprep.subr.bf16.mxu0 0
    %441 = vmatpush1.bf16.msra.mxu0 0
    %442 = vmatprep.subr.bf16.mxu0 0
    %443 = vmatpush1.bf16.msra.mxu0 0
    %444 = vmatprep.subr.bf16.mxu0 0
    %445 = vmatpush1.bf16.msra.mxu0 0
    %446 = vmatprep.subr.bf16.mxu0 0
    %447 = vmatpush1.bf16.msra.mxu0 0
    %448 = vmatprep.subr.bf16.mxu0 0
    %449 = vmatpush1.bf16.msra.mxu0 0
    %450 = vmatprep.subr.bf16.mxu0 0
    %451 = vmatpush1.bf16.msra.mxu0 0
    %452 = vmatprep.subr.bf16.mxu0 0
    %453 = vmatpush1.bf16.msra.mxu0 0
    %454 = vmatprep.subr.bf16.mxu0 0
    %455 = vmatpush1.bf16.msra.mxu0 0
    %456 = vmatprep.subr.bf16.mxu0 0
    %457 = vmatpush1.bf16.msra.mxu0 0
    %458 = vmatprep.subr.bf16.mxu0 0
    %459 = vmatpush1.bf16.msra.mxu0 0
    %460 = vmatprep.subr.bf16.mxu0 0
    %461 = vmatpush1.bf16.msra.mxu0 0
    %462 = vmatprep.mubr.bf16.mxu0 0
    %463 = vmatmul.mubr.bf16.gmra.mrb[0].mxu0 %v421
    %v464 = vpop.f32.mrb[0].mxu0
    %v465 = vadd.f32 %v413, %v464
    %v466 = vpop.f32.mrb[0].mxu0
    %v467 = vpop.f32.mrb[0].mxu0
    %v468 = vadd.f32 %v416, %v467
    %v469 = vpop.f32.mrb[0].mxu0
    %470 = vdwg.mxu0
    %v471 = vlaneseq
    %v472 = vshrl.u32 %v471, 7
    %v473 = vsub.s32 0, %v472
    %v474 = vrot.slane %v29, %v473
    %v475 = vadd.f32 %v465, %v474
    %v476 = vadd.f32 %v468, %v474
    %v477 = vtanh.pop %v475
    %v478 = vtanh.pop %v476
    %v479 = vpack.c.bf16 %v478, %v477
    %v480 = vlaneseq
    %v481 = vshrl.u32 %v480, 7
    %v482 = vsub.s32 0, %v481
    %v483 = vrot.slane %v30, %v482
    %v488 = vunpack.c.l.b16 %v40
    %v489 = vunpack.c.l.b16 %v41
    %v490 = vunpack.c.l.b16 %v42
    %v491 = vunpack.c.l.b16 %v43
    %v492 = vpack.c.b16 %v489, %v488
    %v493 = vpack.c.b16 %v491, %v490
    %v497 = vsel %vm374, %v479, 0
    %499 = vmatprep.subr.bf16.mxu0 0
    %500 = vmatpush1.bf16.msra.mxu0 %v492
    %501 = vmatprep.subr.bf16.mxu0 0
    %502 = vmatpush1.bf16.msra.mxu0 %v493
    %503 = vmatprep.subr.bf16.mxu0 0
    %504 = vmatpush1.bf16.msra.mxu0 0
    %505 = vmatprep.subr.bf16.mxu0 0
    %506 = vmatpush1.bf16.msra.mxu0 0
    %507 = vmatprep.subr.bf16.mxu0 0
    %508 = vmatpush1.bf16.msra.mxu0 0
    %509 = vmatprep.subr.bf16.mxu0 0
    %510 = vmatpush1.bf16.msra.mxu0 0
    %511 = vmatprep.subr.bf16.mxu0 0
    %512 = vmatpush1.bf16.msra.mxu0 0
    %513 = vmatprep.subr.bf16.mxu0 0
    %514 = vmatpush1.bf16.msra.mxu0 0
    %515 = vmatprep.subr.bf16.mxu0 0
    %516 = vmatpush1.bf16.msra.mxu0 0
    %517 = vmatprep.subr.bf16.mxu0 0
    %518 = vmatpush1.bf16.msra.mxu0 0
    %519 = vmatprep.subr.bf16.mxu0 0
    %520 = vmatpush1.bf16.msra.mxu0 0
    %521 = vmatprep.subr.bf16.mxu0 0
    %522 = vmatpush1.bf16.msra.mxu0 0
    %523 = vmatprep.subr.bf16.mxu0 0
    %524 = vmatpush1.bf16.msra.mxu0 0
    %525 = vmatprep.subr.bf16.mxu0 0
    %526 = vmatpush1.bf16.msra.mxu0 0
    %527 = vmatprep.subr.bf16.mxu0 0
    %528 = vmatpush1.bf16.msra.mxu0 0
    %529 = vmatprep.subr.bf16.mxu0 0
    %530 = vmatpush1.bf16.msra.mxu0 0
    %531 = vmatprep.mubr.bf16.mxu0 0
    %532 = vmatmul.mubr.bf16.gmra.mrb[0].mxu0 %v497
    %v533 = vpop.f32.mrb[0].mxu0
    %v534 = vadd.f32 %v483, %v533
    %v535 = vpop.f32.mrb[0].mxu0
    %v536 = vpop.f32.mrb[0].mxu0
    %v537 = vadd.f32 %v483, %v536
    %v538 = vpop.f32.mrb[0].mxu0
    %539 = vdwg.mxu0
    %v540 = vpack.c.bf16 %v537, %v534
    %v541 = vlaneseq
    %v542 = vshrl.u32 %v541, 7
    %v543 = vsub.s32 0, %v542
    %v544 = vrot.slane %v31, %v543
    %v547 = vunpack.c.l.b16 %v44
    %v548 = vunpack.c.l.b16 %v45
    %v549 = vpack.c.b16 %v548, %v547
    %vm551 = vcmask 130048
    %v553 = vsel %vm551, %v540, 0
    %555 = vmatprep.subr.bf16.mxu0 0
    %556 = vmatpush1.bf16.msra.mxu0 %v549
    %557 = vmatprep.subr.bf16.mxu0 0
    %558 = vmatpush1.bf16.msra.mxu0 0
    %559 = vmatprep.subr.bf16.mxu0 0
    %560 = vmatpush1.bf16.msra.mxu0 0
    %561 = vmatprep.subr.bf16.mxu0 0
    %562 = vmatpush1.bf16.msra.mxu0 0
    %563 = vmatprep.subr.bf16.mxu0 0
    %564 = vmatpush1.bf16.msra.mxu0 0
    %565 = vmatprep.subr.bf16.mxu0 0
    %566 = vmatpush1.bf16.msra.mxu0 0
    %567 = vmatprep.subr.bf16.mxu0 0
    %568 = vmatpush1.bf16.msra.mxu0 0
    %569 = vmatprep.subr.bf16.mxu0 0
    %570 = vmatpush1.bf16.msra.mxu0 0
    %571 = vmatprep.subr.bf16.mxu0 0
    %572 = vmatpush1.bf16.msra.mxu0 0
    %573 = vmatprep.subr.bf16.mxu0 0
    %574 = vmatpush1.bf16.msra.mxu0 0
    %575 = vmatprep.subr.bf16.mxu0 0
    %576 = vmatpush1.bf16.msra.mxu0 0
    %577 = vmatprep.subr.bf16.mxu0 0
    %578 = vmatpush1.bf16.msra.mxu0 0
    %579 = vmatprep.subr.bf16.mxu0 0
    %580 = vmatpush1.bf16.msra.mxu0 0
    %581 = vmatprep.subr.bf16.mxu0 0
    %582 = vmatpush1.bf16.msra.mxu0 0
    %583 = vmatprep.subr.bf16.mxu0 0
    %584 = vmatpush1.bf16.msra.mxu0 0
    %585 = vmatprep.subr.bf16.mxu0 0
    %586 = vmatpush1.bf16.msra.mxu0 0
    %587 = vmatprep.mubr.bf16.mxu0 0
    %588 = vmatmul.mubr.bf16.gmra.mrb[0].mxu0 %v553
    %v589 = vpop.f32.mrb[0].mxu0
    %v590 = vadd.f32 %v544, %v589
    %v591 = vpop.f32.mrb[0].mxu0
    %v592 = vpop.f32.mrb[0].mxu0
    %v593 = vadd.f32 %v544, %v592
    %v594 = vpop.f32.mrb[0].mxu0
    %595 = vdwg.mxu0
    %v596 = vtanh.pop %v590
    %v597 = vtanh.pop %v593
    %v598 = vpack.c.bf16 %v597, %v596
    %v603 = vunpack.c.l.b16 %v46
    %v604 = vunpack.c.l.b16 %v47
    %v605 = vunpack.c.l.b16 %v48
    %v606 = vunpack.c.l.b16 %v49
    %v607 = vpack.c.b16 %v604, %v603
    %v608 = vpack.c.b16 %v606, %v605
    %v612 = vsel %vm374, %v598, 0
    %614 = vmatprep.subr.bf16.mxu0 0
    %615 = vmatpush1.bf16.msra.mxu0 %v607
    %616 = vmatprep.subr.bf16.mxu0 0
    %617 = vmatpush1.bf16.msra.mxu0 %v608
    %618 = vmatprep.subr.bf16.mxu0 0
    %619 = vmatpush1.bf16.msra.mxu0 0
    %620 = vmatprep.subr.bf16.mxu0 0
    %621 = vmatpush1.bf16.msra.mxu0 0
    %622 = vmatprep.subr.bf16.mxu0 0
    %623 = vmatpush1.bf16.msra.mxu0 0
    %624 = vmatprep.subr.bf16.mxu0 0
    %625 = vmatpush1.bf16.msra.mxu0 0
    %626 = vmatprep.subr.bf16.mxu0 0
    %627 = vmatpush1.bf16.msra.mxu0 0
    %628 = vmatprep.subr.bf16.mxu0 0
    %629 = vmatpush1.bf16.msra.mxu0 0
    %630 = vmatprep.subr.bf16.mxu0 0
    %631 = vmatpush1.bf16.msra.mxu0 0
    %632 = vmatprep.subr.bf16.mxu0 0
    %633 = vmatpush1.bf16.msra.mxu0 0
    %634 = vmatprep.subr.bf16.mxu0 0
    %635 = vmatpush1.bf16.msra.mxu0 0
    %636 = vmatprep.subr.bf16.mxu0 0
    %637 = vmatpush1.bf16.msra.mxu0 0
    %638 = vmatprep.subr.bf16.mxu0 0
    %639 = vmatpush1.bf16.msra.mxu0 0
    %640 = vmatprep.subr.bf16.mxu0 0
    %641 = vmatpush1.bf16.msra.mxu0 0
    %642 = vmatprep.subr.bf16.mxu0 0
    %643 = vmatpush1.bf16.msra.mxu0 0
    %644 = vmatprep.subr.bf16.mxu0 0
    %645 = vmatpush1.bf16.msra.mxu0 0
    %646 = vmatprep.mubr.bf16.mxu0 0
    %647 = vmatmul.mubr.bf16.gmra.mrb[0].mxu0 %v612
    %v648 = vpop.f32.mrb[0].mxu0
    %v649 = vadd.f32 0.0, %v648
    %v650 = vpop.f32.mrb[0].mxu0
    %v651 = vpop.f32.mrb[0].mxu0
    %v652 = vadd.f32 0.0, %v651
    %v653 = vpop.f32.mrb[0].mxu0
    %654 = vdwg.mxu0
    %v655 = vlaneseq
    %v656 = vshrl.u32 %v655, 7
    %v657 = vsub.s32 0, %v656
    %v658 = vrot.slane %v32, %v657
    %v659 = vadd.f32 %v649, %v658
    %v660 = vadd.f32 %v652, %v658
    %vm661 = vcmask 15360
    %v662 = vsel %vm661, %v659, -inf
    %663 = vmax.xlane.f32.xlu0 %v662
    %v664 = vpop.xlane.xlu0 %663
    %v665 = vsel %vm661, %v660, -inf
    %666 = vmax.xlane.f32.xlu0 %v665
    %v667 = vpop.xlane.xlu0 %666
    %v668 = vsub.f32 %v659, %v664
    %v669 = vsub.f32 %v660, %v667
    %v670 = vmul.f32 %v668, 1.442695
    %v671 = vpow.pop %v670
    %v672 = vmul.f32 %v669, 1.442695
    %v673 = vpow.pop %v672
    %v674 = vsel %vm661, %v671, 0.0
    %675 = vadd.xlane.f32.xlu0 %v674
    %v676 = vpop.xlane.xlu0 %675
    %v677 = vsel %vm661, %v673, 0.0
    %678 = vadd.xlane.f32.xlu0 %v677
    %v679 = vpop.xlane.xlu0 %678
    %v680 = vlog2.pop %v676
    %v681 = vmul.f32 %v680, 0.6931472
    %v682 = vlog2.pop %v679
    %v683 = vmul.f32 %v682, 0.6931472
    %v684 = vsub.f32 %v668, %v681
    %v685 = vsub.f32 %v669, %v683
    %688 = vrot.lane.b32.xlu0 %v684, 3
    %v689 = vpop.permute.xlu0 %688
    %690 = vrot.lane.b32.xlu0 %v685, 3
    %v691 = vpop.permute.xlu0 %690
    %v694 = vmul.f32 %v359, %v689
    %v695 = vmul.f32 %v360, %v691
    %698 = vrot.lane.b32.xlu0 %v694, 125
    %v699 = vpop.permute.xlu0 %698
    %700 = vrot.lane.b32.xlu0 %v695, 125
    %v701 = vpop.permute.xlu0 %700
    %v704 = vsel %vm661, %v699, 0.0
    %705 = vadd.xlane.f32.xlu0 %v704
    %v706 = vpop.xlane.xlu0 %705
    %v707 = vsel %vm661, %v701, 0.0
    %708 = vadd.xlane.f32.xlu0 %v707
    %v709 = vpop.xlane.xlu0 %708
    %v710 = vsub.f32 0.0, %v706
    %v711 = vsub.f32 0.0, %v709
    %v712 = vmul.f32 %v534, 1.442695
    %v713 = vpow.pop %v712
    %v714 = vmul.f32 %v537, 1.442695
    %v715 = vpow.pop %v714
    %v716 = vmul.f32 %v534, %v534
    %v717 = vmul.f32 %v537, %v537
    %720 = vrot.lane.b32.xlu0 %v716, 16
    %v721 = vpop.permute.xlu0 %720
    %722 = vrot.lane.b32.xlu0 %v717, 16
    %v723 = vpop.permute.xlu0 %722
    %v726 = vadd.f32 %v713, %v721
    %v727 = vadd.f32 %v715, %v723
    %v728 = vsub.f32 %v726, 1.0
    %v729 = vsub.f32 %v727, 1.0
    %v730 = vsub.f32 %v728, %v534
    %v731 = vsub.f32 %v729, %v537
    %734 = vrot.lane.b32.xlu0 %v730, 112
    %v735 = vpop.permute.xlu0 %734
    %736 = vrot.lane.b32.xlu0 %v731, 112
    %v737 = vpop.permute.xlu0 %736
    %v740 = vsel %vm551, %v735, 0.0
    %741 = vadd.xlane.f32.xlu0 %v740
    %v742 = vpop.xlane.xlu0 %741
    %v743 = vsel %vm551, %v737, 0.0
    %744 = vadd.xlane.f32.xlu0 %v743
    %v745 = vpop.xlane.xlu0 %744
    %v746 = vmul.f32 %v742, 0.5
    %v747 = vmul.f32 %v745, 0.5
    %v748 = vlaneseq
    %v749 = vshrl.u32 %v748, 7
    %s750 = sld [smem:[#allocation3]]
    %v751 = vstv %s750
    %vm752 = vcmp.eq.s32.totalorder %v749, %v751
    %v753 = vsel %vm752, 1, 0
    %v754 = vcvt.s32.f32 %v753
    %vm755 = vcmp.lt.s32.totalorder %v749, %v751
    %v756 = vsel %vm755, 1, 0
    %v757 = vcvt.s32.f32 %v756
    %v758 = vmul.f32 %v649, %v754
    %vm759 = vcmask 277648
    %v760 = vsel %vm759, %v758, 0.0
    %v761 = vrot.slane %v760, 4
    %v762 = vadd.f32 %v760, %v761
    %v763 = vrot.slane %v762, 2
    %v764 = vadd.f32 %v762, %v763
    %v765 = vrot.slane %v764, 1
    %v766 = vadd.f32 %v764, %v765
    %768 = vrot.lane.b32.xlu0 %v766, 112
    %v769 = vpop.permute.xlu0 %768
    %v771 = vadd.f32 %v649, %v769
    %v772 = vtanh.pop %v771
    %v773 = vlaneseq
    %v774 = vshrl.u32 %v773, 7
    %v775 = vsub.s32 0, %v774
    %v776 = vrot.slane %v33, %v775
    %778 = vrot.lane.b32.xlu0 %v776, 2
    %v779 = vpop.permute.xlu0 %778
    %v781 = vmul.f32 %v772, %v779
    %783 = vrot.lane.b32.xlu0 %v781, 126
    %v784 = vpop.permute.xlu0 %783
    %v786 = vsel %vm551, %v784, 0.0
    %787 = vadd.xlane.f32.xlu0 %v786
    %v788 = vpop.xlane.xlu0 %787
    %vm789 = vcmp.gt.f32.partialorder %v757, 0.0
    %v790 = vsel %vm789, %v788, -1e+30
    %v791 = vrot.slane %v790, 4
    %v792 = vmax.f32 %v790, %v791
    %v793 = vrot.slane %v792, 2
    %v794 = vmax.f32 %v792, %v793
    %v795 = vrot.slane %v794, 1
    %v796 = vmax.f32 %v794, %v795
    %v797 = vsub.f32 %v790, %v796
    %v798 = vmul.f32 %v797, 1.442695
    %v799 = vpow.pop %v798
    %v800 = vmul.f32 %v799, %v757
    %v801 = vrot.slane %v800, 4
    %v802 = vadd.f32 %v800, %v801
    %v803 = vrot.slane %v802, 2
    %v804 = vadd.f32 %v802, %v803
    %v805 = vrot.slane %v804, 1
    %v806 = vadd.f32 %v804, %v805
    %v807 = vadd.f32 %v806, 1e-09
    %v808 = vrcp.pop %v807
    %v809 = vmul.f32 %v800, %v808
    %v810 = vmul.f32 %v710, %v754
    %v811 = vrot.slane %v810, 4
    %v812 = vadd.f32 %v810, %v811
    %v813 = vrot.slane %v812, 2
    %v814 = vadd.f32 %v812, %v813
    %v815 = vrot.slane %v814, 1
    %v816 = vadd.f32 %v814, %v815
    %v817 = vmul.f32 %v809, %v710
    %v818 = vrot.slane %v817, 4
    %v819 = vadd.f32 %v817, %v818
    %v820 = vrot.slane %v819, 2
    %v821 = vadd.f32 %v819, %v820
    %v822 = vrot.slane %v821, 1
    %v823 = vadd.f32 %v821, %v822
    %v824 = vmul.f32 %v746, %v757
    %v825 = vrot.slane %v824, 4
    %v826 = vadd.f32 %v824, %v825
    %v827 = vrot.slane %v826, 2
    %v828 = vadd.f32 %v826, %v827
    %v829 = vrot.slane %v828, 1
    %v830 = vadd.f32 %v828, %v829
    %v831 = vrot.slane %v757, 4
    %v832 = vadd.f32 %v757, %v831
    %v833 = vrot.slane %v832, 2
    %v834 = vadd.f32 %v832, %v833
    %v835 = vrot.slane %v834, 1
    %v836 = vadd.f32 %v834, %v835
    %v837 = vadd.f32 %v836, 1e-09
    %v838 = vrcp.pop %v837
    %v839 = vmul.f32 %v830, %v838
    %v840 = vadd.f32 %v816, 0.0
    %v841 = vmul.f32 %v823, 0.5
    %v842 = vadd.f32 %v840, %v841
    %v843 = vmul.f32 %v34, %v839
    %v844 = vadd.f32 %v842, %v843
    %v845 = vmul.f32 %v684, %v754
    %v846 = vsel %vm661, %v845, 0.0
    %v847 = vrot.slane %v846, 4
    %v848 = vadd.f32 %v846, %v847
    %v849 = vrot.slane %v848, 2
    %v850 = vadd.f32 %v848, %v849
    %v851 = vrot.slane %v850, 1
    %v852 = vadd.f32 %v850, %v851
    %v853 = vmul.f32 %v852, 1.442695
    %v854 = vpow.pop %v853
    %s855 = sld [smem:[#allocation3 + $0x1]]
    %v856 = vstv %s855
    %vm857 = vcmp.eq.s32.totalorder %v749, %v856
    %v858 = vsel %vm857, 1, 0
    %v859 = vcvt.s32.f32 %v858
    %vm860 = vcmp.lt.s32.totalorder %v749, %v856
    %v861 = vsel %vm860, 1, 0
    %v862 = vcvt.s32.f32 %v861
    %v863 = vmul.f32 %v652, %v859
    %v864 = vsel %vm759, %v863, 0.0
    %v865 = vrot.slane %v864, 4
    %v866 = vadd.f32 %v864, %v865
    %v867 = vrot.slane %v866, 2
    %v868 = vadd.f32 %v866, %v867
    %v869 = vrot.slane %v868, 1
    %v870 = vadd.f32 %v868, %v869
    %872 = vrot.lane.b32.xlu0 %v870, 112
    %v873 = vpop.permute.xlu0 %872
    %v875 = vadd.f32 %v652, %v873
    %v876 = vtanh.pop %v875
    %v877 = vmul.f32 %v876, %v779
    %879 = vrot.lane.b32.xlu0 %v877, 126
    %v880 = vpop.permute.xlu0 %879
    %v882 = vsel %vm551, %v880, 0.0
    %883 = vadd.xlane.f32.xlu0 %v882
    %v884 = vpop.xlane.xlu0 %883
    %vm885 = vcmp.gt.f32.partialorder %v862, 0.0
    %v886 = vsel %vm885, %v884, -1e+30
    %v887 = vrot.slane %v886, 4
    %v888 = vmax.f32 %v886, %v887
    %v889 = vrot.slane %v888, 2
    %v890 = vmax.f32 %v888, %v889
    %v891 = vrot.slane %v890, 1
    %v892 = vmax.f32 %v890, %v891
    %v893 = vsub.f32 %v886, %v892
    %v894 = vmul.f32 %v893, 1.442695
    %v895 = vpow.pop %v894
    %v896 = vmul.f32 %v895, %v862
    %v897 = vrot.slane %v896, 4
    %v898 = vadd.f32 %v896, %v897
    %v899 = vrot.slane %v898, 2
    %v900 = vadd.f32 %v898, %v899
    %v901 = vrot.slane %v900, 1
    %v902 = vadd.f32 %v900, %v901
    %v903 = vadd.f32 %v902, 1e-09
    %v904 = vrcp.pop %v903
    %v905 = vmul.f32 %v896, %v904
    %v906 = vmul.f32 %v711, %v859
    %v907 = vrot.slane %v906, 4
    %v908 = vadd.f32 %v906, %v907
    %v909 = vrot.slane %v908, 2
    %v910 = vadd.f32 %v908, %v909
    %v911 = vrot.slane %v910, 1
    %v912 = vadd.f32 %v910, %v911
    %v913 = vmul.f32 %v905, %v711
    %v914 = vrot.slane %v913, 4
    %v915 = vadd.f32 %v913, %v914
    %v916 = vrot.slane %v915, 2
    %v917 = vadd.f32 %v915, %v916
    %v918 = vrot.slane %v917, 1
    %v919 = vadd.f32 %v917, %v918
    %v920 = vmul.f32 %v747, %v862
    %v921 = vrot.slane %v920, 4
    %v922 = vadd.f32 %v920, %v921
    %v923 = vrot.slane %v922, 2
    %v924 = vadd.f32 %v922, %v923
    %v925 = vrot.slane %v924, 1
    %v926 = vadd.f32 %v924, %v925
    %v927 = vrot.slane %v862, 4
    %v928 = vadd.f32 %v862, %v927
    %v929 = vrot.slane %v928, 2
    %v930 = vadd.f32 %v928, %v929
    %v931 = vrot.slane %v930, 1
    %v932 = vadd.f32 %v930, %v931
    %v933 = vadd.f32 %v932, 1e-09
    %v934 = vrcp.pop %v933
    %v935 = vmul.f32 %v926, %v934
    %v936 = vadd.f32 %v844, %v912
    %v937 = vmul.f32 %v919, 0.5
    %v938 = vadd.f32 %v936, %v937
    %v939 = vmul.f32 %v34, %v935
    %v940 = vadd.f32 %v938, %v939
    %v941 = vmul.f32 %v685, %v859
    %v942 = vsel %vm661, %v941, 0.0
    %v943 = vrot.slane %v942, 4
    %v944 = vadd.f32 %v942, %v943
    %v945 = vrot.slane %v944, 2
    %v946 = vadd.f32 %v944, %v945
    %v947 = vrot.slane %v946, 1
    %v948 = vadd.f32 %v946, %v947
    %v949 = vmul.f32 %v948, 1.442695
    %v950 = vpow.pop %v949
    %v951 = vsel %vm423, %v854, %v950
    %vm952 = vcmask 9216
    %953 = vst.msk [vmem:[#allocation4] sm:$0x3] %vm952, %v951
    %v954 = vmul.f32 %v940, 0.5
    %vm955 = vcmask 0
    %956 = vst.msk [vmem:[#allocation6] sm:$0x1] %vm955, %v954
    // Predicated region
    $region18: #{tpu_custom_call.1} parent=1 // pred_check
      _
    $region19: #{tpu_custom_call.1} parent=1 // pred_check_branch
      %958 = sbr.rel (0) target = $region21
    $region20: #{tpu_custom_call.1} parent=1 // pred_region
      %s960 = ssub.s32 32, 32
      %961 = vsyncadd [#allocation5], %s960
      %s963 = sshll.u32 [#allocation4], 4
      %s964 = int_to_ptr.vmem [resolvable:$true] %s963
      %966 = dma.vmem_to_hbm [thread:$0]  %s964, 32, %s5, [#allocation5]
    $region21: #{tpu_custom_call.1} parent=1 // pred_fallthru
      _
    // Predicated region
    $region22: #{tpu_custom_call.1} parent=1 // pred_check
      _
    $region23: #{tpu_custom_call.1} parent=1 // pred_check_branch
      %968 = sbr.rel (0) target = $region25
    $region24: #{tpu_custom_call.1} parent=1 // pred_region
      %s970 = ssub.s32 16, 16
      %971 = vsyncadd [#allocation7], %s970
      %s973 = sshll.u32 [#allocation6], 4
      %s974 = int_to_ptr.vmem [resolvable:$true] %s973
      %976 = dma.vmem_to_hbm [thread:$0]  %s974, 16, %s6, [#allocation7]
    $region25: #{tpu_custom_call.1} parent=1 // pred_fallthru
      _
    // Predicated region
    $region26: #{tpu_custom_call.1} parent=1 // pred_check
      _
    $region27: #{tpu_custom_call.1} parent=1 // pred_check_branch
      %978 = sbr.rel (0) target = $region29
    $region28: #{tpu_custom_call.1} parent=1 // pred_region
      %979 = dma.done [#allocation5], 32
    $region29: #{tpu_custom_call.1} parent=1 // pred_fallthru
      _
    // Predicated region
    $region30: #{tpu_custom_call.1} parent=1 // pred_check
      _
    $region31: #{tpu_custom_call.1} parent=1 // pred_check_branch
      %981 = sbr.rel (0) target = $region33
    $region32: #{tpu_custom_call.1} parent=1 // pred_region
      %982 = dma.done [#allocation7], 16
    $region33: #{tpu_custom_call.1} parent=1 // pred_fallthru
      _
    %983 = vsyncpa [#allocation5], 1
    %984 = vsyncpa [#allocation7], 1

</llo_original>
